<compile_context>
chip_gen: v7x
topology: tpu7x:2x2x1
jax: 0.10.0
libtpu: 0.0.40
codegen_flags: <defaults>
</compile_context>

<pallas_src>
import functools

import jax
import jax.numpy as jnp
import numpy as np
from jax import lax
from jax.experimental import pallas as pl
from jax.experimental.pallas import tpu as pltpu


# ----------------------------- Pallas kernel --------------------------------
def _matmul_bias_act_kernel(x_ref, w_ref, b_ref, o_ref, *, act):
    # x_ref: (tm, Kp)  bf16     w_ref: (Kp, Np) bf16  (BN scale already folded)
    # b_ref: (1, Np)   f32      o_ref: (tm, Np) f32
    y = jnp.dot(x_ref[...], w_ref[...], preferred_element_type=jnp.float32)
    y = y + b_ref[...]
    if act == "relu6":
        y = jnp.clip(y, 0.0, 6.0)
    elif act == "relu6_sigmoid":      # ConvBlock relu6 followed by torch.sigmoid
        y = jax.nn.sigmoid(jnp.clip(y, 0.0, 6.0))
    elif act == "tanh":
        y = jnp.tanh(y)
    elif act != "none":
        raise ValueError(f"unknown act: {act}")
    o_ref[...] = y.astype(o_ref.dtype)


def _round_up(v, m):
    return (v + m - 1) // m * m


def fused_matmul_bias_act(x, w, b, *, act, tm_max=512):
    """act(x @ w + b) on the MXU: lane/contraction padding + bf16 operands."""
    m, k = x.shape
    k2, nout = w.shape
    assert k == k2, (k, k2)
    b = jnp.asarray(b).reshape(1, nout)

    # Pad K and Cout to multiples of 128 -> unmasked vld/vst, full MXU tiles.
    k_pad = _round_up(k, 128)
    n_pad = _round_up(nout, 128)

    # Row tile: large (up to tm_max) to amortize per-grid-step overhead, but
    # keep >= 2 tiles when M allows so the parallel axis spans both v7x cores.
    tm = min(tm_max, _round_up(m, 16))
    if m > 16 and _round_up(m, tm) // tm < 2:
        tm = _round_up((m + 1) // 2, 16)
    m_pad = _round_up(m, tm)

    xp = jnp.pad(x.astype(jnp.bfloat16), ((0, m_pad - m), (0, k_pad - k)))
    wp = jnp.pad(w.astype(jnp.bfloat16), ((0, k_pad - k), (0, n_pad - nout)))
    bp = jnp.pad(b.astype(jnp.float32), ((0, 0), (0, n_pad - nout)))

    grid = (m_pad // tm,)
    out = pl.pallas_call(
        functools.partial(_matmul_bias_act_kernel, act=act),
        out_shape=jax.ShapeDtypeStruct((m_pad, n_pad), jnp.float32),
        grid_spec=pltpu.PrefetchScalarGridSpec(
            num_scalar_prefetch=0,
            grid=grid,
            in_specs=[
                pl.BlockSpec((tm, k_pad), lambda i: (i, 0)),
                pl.BlockSpec((k_pad, n_pad), lambda i: (0, 0)),
                pl.BlockSpec((1, n_pad), lambda i: (0, 0)),
            ],
            out_specs=pl.BlockSpec((tm, n_pad), lambda i: (i, 0)),
        ),
        compiler_params=pltpu.CompilerParams(
            dimension_semantics=("parallel",),
            vmem_limit_bytes=32 * 1024 * 1024,   # explicit; fits v7x 64 MiB VMEM
        ),
    )(xp, wp, bp)
    return out[:m, :nout]


# ------------------------------ JAX-side glue --------------------------------
def _fold_conv_bn(w_oihw, gamma, beta, mean, var, *, eps=1e-5):
    """Conv (Cout,Cin,kh,kw) + eval BN -> (K, Cout) folded weight, (1, Cout) bias."""
    cout = w_oihw.shape[0]
    w2d = w_oihw.reshape(cout, -1).T                    # K ordered (cin, kh, kw)
    scale = gamma / jnp.sqrt(var + eps)
    return w2d * scale[None, :], (beta - mean * scale)[None, :]


def _im2col_1ch(s, *, k, stride, pad):
    """Single-channel im2col. s: (N, H, W) -> (N*Hout*Wout, k*k), K order (kh, kw)."""
    n, h, w = s.shape
    sp = jnp.pad(s, ((0, 0), (pad, pad), (pad, pad)))
    hout = (h + 2 * pad - k) // stride + 1
    wout = (w + 2 * pad - k) // stride + 1
    cols = []
    for kh in range(k):
        for kw in range(k):
            cols.append(sp[:, kh:kh + stride * hout:stride, kw:kw + stride * wout:stride])
    patches = jnp.stack(cols, axis=-1)                  # (N, Hout, Wout, k*k)
    return patches.reshape(n * hout * wout, k * k), hout, wout


def _upsample_x2_bilinear_align_corners(s):
    """(N, Hc, Wc) -> (N, 2Hc, 2Wc); matches F.upsample(mode='bilinear', align_corners=True)."""
    n, hc, wc = s.shape
    ho, wo = 2 * hc, 2 * wc

    def grid1d(n_in, n_out):
        src = jnp.arange(n_out, dtype=jnp.float32) * (n_in - 1) / (n_out - 1)
        i0 = jnp.clip(jnp.floor(src).astype(jnp.int32), 0, n_in - 1)
        i1 = jnp.clip(i0 + 1, 0, n_in - 1)
        return i0, i1, src - i0.astype(jnp.float32)

    h0, h1, hf = grid1d(hc, ho)
    w0, w1, wf = grid1d(wc, wo)
    rows = s[:, h0, :] * (1.0 - hf)[None, :, None] + s[:, h1, :] * hf[None, :, None]
    return rows[:, :, w0] * (1.0 - wf)[None, None, :] + rows[:, :, w1] * wf[None, None, :]


def harm_attn_forward(x, params, *, eps=1e-5, tm_max=512):
    """HarmAttn forward. x: (N, C, H, W) f32 -> (y_soft (N,C,H,W), theta (N,4,2))."""
    n, c, h, w = x.shape
    # NCHW -> NHWC exactly once at the module boundary (channels on the lane axis).
    x_nhwc = jnp.transpose(x, (0, 2, 3, 1))

    # Global average pool shared by ChannelAttn and HardAttn.
    # TODO(synk): the pooling / channel-mean reductions are plain-JAX glue (memory-bound).
    pooled = jnp.mean(x_nhwc, axis=(1, 2))                                   # (N, C)

    # ---------------- HardAttn: theta = tanh(Linear(GAP(x))) -----------------
    theta = fused_matmul_bias_act(pooled, params["fc_w"].T, params["fc_b"],
                                  act="tanh", tm_max=tm_max)                  # (N, 8)
    theta = theta.reshape(n, 4, 2)

    # ---------------- SpatialAttn --------------------------------------------
    sp = jnp.mean(x_nhwc, axis=3)                                             # (N, H, W)
    patches, hc, wc = _im2col_1ch(sp, k=3, stride=2, pad=1)                   # (N*hc*wc, 9)
    w_sa1, b_sa1 = _fold_conv_bn(params["sa1_w"], *params["sa1_bn"], eps=eps)
    y1 = fused_matmul_bias_act(patches, w_sa1, b_sa1, act="relu6", tm_max=tm_max)
    y1 = y1.reshape(n, hc, wc)
    # TODO(synk): bilinear x2 upsample (align_corners=True) left in plain JAX (gather+lerp glue).
    y1 = _upsample_x2_bilinear_align_corners(y1)                              # (N, H, W)
    w_sa2, b_sa2 = _fold_conv_bn(params["sa2_w"], *params["sa2_bn"], eps=eps)
    y_spatial = fused_matmul_bias_act(y1.reshape(-1, 1), w_sa2, b_sa2,
                                      act="relu6", tm_max=tm_max)
    y_spatial = y_spatial.reshape(n, h, w)

    # ---------------- ChannelAttn (1x1 convs == matmuls) ---------------------
    w_ca1, b_ca1 = _fold_conv_bn(params["ca1_w"], *params["ca1_bn"], eps=eps)
    w_ca2, b_ca2 = _fold_conv_bn(params["ca2_w"], *params["ca2_bn"], eps=eps)
    yc = fused_matmul_bias_act(pooled, w_ca1, b_ca1, act="relu6", tm_max=tm_max)
    y_channel = fused_matmul_bias_act(yc, w_ca2, b_ca2, act="relu6", tm_max=tm_max)  # (N, C)

    # ---------------- SoftAttn: sigmoid(ConvBlock1x1(spatial * channel)) -----
    y = y_spatial[:, :, :, None] * y_channel[:, None, None, :]                # (N, H, W, C)
    w_sc, b_sc = _fold_conv_bn(params["sc_w"], *params["sc_bn"], eps=eps)
    y_soft = fused_matmul_bias_act(y.reshape(n * h * w, c), w_sc, b_sc,
                                   act="relu6_sigmoid", tm_max=tm_max)
    y_soft = jnp.transpose(y_soft.reshape(n, h, w, c), (0, 3, 1, 2))          # NHWC -> NCHW once

    return y_soft, theta


# -------------------------------- reference ----------------------------------
def _conv_block_ref(x, w, gamma, beta, mean, var, *, stride=1, pad=0, eps=1e-5):
    y = lax.conv_general_dilated(
        x, w, window_strides=(stride, stride), padding=[(pad, pad), (pad, pad)],
        dimension_numbers=("NCHW", "OIHW", "NCHW"))
    scale = gamma / jnp.sqrt(var + eps)
    y = y * scale[None, :, None, None] + (beta - mean * scale)[None, :, None, None]
    return jnp.clip(y, 0.0, 6.0)


def reference_harm_attn(x, params, eps=1e-5):
    n = x.shape[0]
    sp = jnp.mean(x, axis=1, keepdims=True)
    sp = _conv_block_ref(sp, params["sa1_w"], *params["sa1_bn"], stride=2, pad=1, eps=eps)
    sp = _upsample_x2_bilinear_align_corners(sp[:, 0])[:, None]
    sp = _conv_block_ref(sp, params["sa2_w"], *params["sa2_bn"], eps=eps)
    ch = jnp.mean(x, axis=(2, 3), keepdims=True)
    ch = _conv_block_ref(ch, params["ca1_w"], *params["ca1_bn"], eps=eps)
    ch = _conv_block_ref(ch, params["ca2_w"], *params["ca2_bn"], eps=eps)
    y_soft = jax.nn.sigmoid(_conv_block_ref(sp * ch, params["sc_w"], *params["sc_bn"], eps=eps))
    pooled = jnp.mean(x, axis=(2, 3))
    theta = jnp.tanh(pooled @ params["fc_w"].T + params["fc_b"]).reshape(n, 4, 2)
    return y_soft, theta


# ----------------------------------- main -------------------------------------
if __name__ == "__main__":
    N, C, H, W = 2, 16, 16, 16          # in_channels divisible by reduction_rate=8

    key = jax.random.PRNGKey(0)
    ks = jax.random.split(key, 12)

    def bn_params(k, ch):
        k1, k2, k3, k4 = jax.random.split(k, 4)
        gamma = 1.0 + 0.1 * jax.random.normal(k1, (ch,), jnp.float32)
        beta = 0.2 * jax.random.normal(k2, (ch,), jnp.float32)
        mean = 0.1 * jax.random.normal(k3, (ch,), jnp.float32)
        var = jnp.abs(1.0 + 0.1 * jax.random.normal(k4, (ch,), jnp.float32))
        return (gamma, beta, mean, var)

    x = jax.random.normal(ks[0], (N, C, H, W), jnp.float32)
    params = {
        # SpatialAttn: ConvBlock(1,1,3,s=2,p=1), ConvBlock(1,1,1)
        "sa1_w": 0.5 * jax.random.normal(ks[1], (1, 1, 3, 3), jnp.float32),
        "sa1_bn": bn_params(ks[2], 1),
        "sa2_w": 0.5 * jax.random.normal(ks[3], (1, 1, 1, 1), jnp.float32),
        "sa2_bn": bn_params(ks[4], 1),
        # ChannelAttn: ConvBlock(C, C/8, 1), ConvBlock(C/8, C, 1)
        "ca1_w": 0.5 * jax.random.normal(ks[5], (C // 8, C, 1, 1), jnp.float32),
        "ca1_bn": bn_params(ks[6], C // 8),
        "ca2_w": 0.5 * jax.random.normal(ks[7], (C, C // 8, 1, 1), jnp.float32),
        "ca2_bn": bn_params(ks[8], C),
        # SoftAttn final ConvBlock(C, C, 1)
        "sc_w": 0.5 * jax.random.normal(ks[9], (C, C, 1, 1), jnp.float32),
        "sc_bn": bn_params(ks[10], C),
        # HardAttn.init_params(): zero weight + fixed bias
        "fc_w": jnp.zeros((8, C), jnp.float32),
        "fc_b": jnp.array([0.0, -0.75, 0.0, -0.25, 0.0, 0.25, 0.0, 0.75], jnp.float32),
    }

    fwd = jax.jit(harm_attn_forward)
    y_soft, theta = fwd(x, params)
    (y_soft, theta) = jax.block_until_ready((y_soft, theta))

    y_ref, t_ref = reference_harm_attn(x, params)
    assert y_soft.shape == x.shape and theta.shape == (N, 4, 2)
    # bf16 matmul operands with f32 accumulation -> relaxed tolerance vs f32 reference.
    np.testing.assert_allclose(np.asarray(y_soft), np.asarray(y_ref), atol=2e-2, rtol=2e-2)
    np.testing.assert_allclose(np.asarray(theta), np.asarray(t_ref), atol=1e-3, rtol=1e-3)

    print("KERNEL_OK")
</pallas_src>

<mosaic_0001>
module attributes {stable_mosaic.version = 11 : i64} {
  func.func @_matmul_bias_act_kernel(%arg0: i32, %arg1: memref<16x128xbf16, #tpu.memory_space<vmem>>, %arg2: memref<128x128xbf16, #tpu.memory_space<vmem>>, %arg3: memref<1x128xf32, #tpu.memory_space<vmem>>, %arg4: memref<16x128xf32, #tpu.memory_space<vmem>>) attributes {dimension_semantics = [#tpu.dimension_semantics<parallel>], iteration_bounds = array<i64: 1>, scalar_prefetch = 0 : i64, scratch_operands = 0 : i64, tpu.core_type = #tpu.core_type<tc>, window_params = [{transform_indices = @transform_0, window_bounds = array<i64: 16, 128>}, {pipeline_mode = #tpu.pipeline_mode<synchronous>, transform_indices = @transform_1, window_bounds = array<i64: 128, 128>}, {pipeline_mode = #tpu.pipeline_mode<synchronous>, transform_indices = @transform_2, window_bounds = array<i64: 1, 128>}, {transform_indices = @transform_3, window_bounds = array<i64: 16, 128>}]} {
    %c0 = arith.constant 0 : index
    %c0_0 = arith.constant 0 : index
    %0 = vector.load %arg1[%c0, %c0_0] : memref<16x128xbf16, #tpu.memory_space<vmem>>, vector<16x128xbf16>
    %c0_1 = arith.constant 0 : index
    %c0_2 = arith.constant 0 : index
    %1 = vector.load %arg2[%c0_1, %c0_2] : memref<128x128xbf16, #tpu.memory_space<vmem>>, vector<128x128xbf16>
    %cst = arith.constant dense<0.000000e+00> : vector<16x128xf32>
    %2 = tpu.matmul %0, %1, %cst {dimension_numbers = #tpu.dot_dimension_numbers<[1], [0], [0], [1], [0, 0, 1, 1], [], []>} : vector<16x128xbf16>, vector<128x128xbf16>, vector<16x128xf32> -> vector<16x128xf32>
    %c0_3 = arith.constant 0 : index
    %c0_4 = arith.constant 0 : index
    %3 = vector.load %arg3[%c0_3, %c0_4] : memref<1x128xf32, #tpu.memory_space<vmem>>, vector<1x128xf32>
    %4 = vector.broadcast %3 : vector<1x128xf32> to vector<16x128xf32>
    %5 = arith.addf %2, %4 : vector<16x128xf32>
    %cst_5 = arith.constant 0.000000e+00 : f32
    %cst_6 = arith.constant 6.000000e+00 : f32
    %6 = vector.broadcast %cst_5 : f32 to vector<16x128xf32>
    %7 = arith.maximumf %6, %5 : vector<16x128xf32>
    %8 = vector.broadcast %cst_6 : f32 to vector<16x128xf32>
    %9 = arith.minimumf %8, %7 : vector<16x128xf32>
    %c0_7 = arith.constant 0 : index
    %c0_8 = arith.constant 0 : index
    %10 = vector.load %arg4[%c0_7, %c0_8] : memref<16x128xf32, #tpu.memory_space<vmem>>, vector<16x128xf32>
    tpu.vector_store %arg4[%c0_7, %c0_8], %9 {strides = array<i32>} : memref<16x128xf32, #tpu.memory_space<vmem>>, vector<16x128xf32>,
    return
  }
  func.func @transform_0(%arg0: i32) -> (i32, i32) {
    %c0_i32 = arith.constant 0 : i32
    %c0_i32_0 = arith.constant 0 : i32
    return %arg0, %c0_i32 : i32, i32
  }
  func.func @transform_1(%arg0: i32) -> (i32, i32) {
    %c0_i32 = arith.constant 0 : i32
    %c0_i32_0 = arith.constant 0 : i32
    %c0_i32_1 = arith.constant 0 : i32
    return %c0_i32, %c0_i32_0 : i32, i32
  }
  func.func @transform_2(%arg0: i32) -> (i32, i32) {
    %c0_i32 = arith.constant 0 : i32
    %c0_i32_0 = arith.constant 0 : i32
    %c0_i32_1 = arith.constant 0 : i32
    return %c0_i32, %c0_i32_0 : i32, i32
  }
  func.func @transform_3(%arg0: i32) -> (i32, i32) {
    %c0_i32 = arith.constant 0 : i32
    %c0_i32_0 = arith.constant 0 : i32
    return %arg0, %c0_i32 : i32, i32
  }
}

module attributes {stable_mosaic.version = 11 : i64} {
  func.func @_matmul_bias_act_kernel(%arg0: i32, %arg1: memref<64x128xbf16, #tpu.memory_space<vmem>>, %arg2: memref<128x128xbf16, #tpu.memory_space<vmem>>, %arg3: memref<1x128xf32, #tpu.memory_space<vmem>>, %arg4: memref<64x128xf32, #tpu.memory_space<vmem>>) attributes {dimension_semantics = [#tpu.dimension_semantics<parallel>], iteration_bounds = array<i64: 2>, scalar_prefetch = 0 : i64, scratch_operands = 0 : i64, tpu.core_type = #tpu.core_type<tc>, window_params = [{transform_indices = @transform_0, window_bounds = array<i64: 64, 128>}, {pipeline_mode = #tpu.pipeline_mode<synchronous>, transform_indices = @transform_1, window_bounds = array<i64: 128, 128>}, {pipeline_mode = #tpu.pipeline_mode<synchronous>, transform_indices = @transform_2, window_bounds = array<i64: 1, 128>}, {transform_indices = @transform_3, window_bounds = array<i64: 64, 128>}]} {
    %c0 = arith.constant 0 : index
    %c0_0 = arith.constant 0 : index
    %0 = vector.load %arg1[%c0, %c0_0] : memref<64x128xbf16, #tpu.memory_space<vmem>>, vector<64x128xbf16>
    %c0_1 = arith.constant 0 : index
    %c0_2 = arith.constant 0 : index
    %1 = vector.load %arg2[%c0_1, %c0_2] : memref<128x128xbf16, #tpu.memory_space<vmem>>, vector<128x128xbf16>
    %cst = arith.constant dense<0.000000e+00> : vector<64x128xf32>
    %2 = tpu.matmul %0, %1, %cst {dimension_numbers = #tpu.dot_dimension_numbers<[1], [0], [0], [1], [0, 0, 1, 1], [], []>} : vector<64x128xbf16>, vector<128x128xbf16>, vector<64x128xf32> -> vector<64x128xf32>
    %c0_3 = arith.constant 0 : index
    %c0_4 = arith.constant 0 : index
    %3 = vector.load %arg3[%c0_3, %c0_4] : memref<1x128xf32, #tpu.memory_space<vmem>>, vector<1x128xf32>
    %4 = vector.broadcast %3 : vector<1x128xf32> to vector<64x128xf32>
    %5 = arith.addf %2, %4 : vector<64x128xf32>
    %cst_5 = arith.constant 0.000000e+00 : f32
    %cst_6 = arith.constant 6.000000e+00 : f32
    %6 = vector.broadcast %cst_5 : f32 to vector<64x128xf32>
    %7 = arith.maximumf %6, %5 : vector<64x128xf32>
    %8 = vector.broadcast %cst_6 : f32 to vector<64x128xf32>
    %9 = arith.minimumf %8, %7 : vector<64x128xf32>
    %c0_7 = arith.constant 0 : index
    %c0_8 = arith.constant 0 : index
    %10 = vector.load %arg4[%c0_7, %c0_8] : memref<64x128xf32, #tpu.memory_space<vmem>>, vector<64x128xf32>
    tpu.vector_store %arg4[%c0_7, %c0_8], %9 {strides = array<i32>} : memref<64x128xf32, #tpu.memory_space<vmem>>, vector<64x128xf32>,
    return
  }
  func.func @transform_0(%arg0: i32) -> (i32, i32) {
    %c0_i32 = arith.constant 0 : i32
    %c0_i32_0 = arith.constant 0 : i32
    return %arg0, %c0_i32 : i32, i32
  }
  func.func @transform_1(%arg0: i32) -> (i32, i32) {
    %c0_i32 = arith.constant 0 : i32
    %c0_i32_0 = arith.constant 0 : i32
    %c0_i32_1 = arith.constant 0 : i32
    return %c0_i32, %c0_i32_0 : i32, i32
  }
  func.func @transform_2(%arg0: i32) -> (i32, i32) {
    %c0_i32 = arith.constant 0 : i32
    %c0_i32_0 = arith.constant 0 : i32
    %c0_i32_1 = arith.constant 0 : i32
    return %c0_i32, %c0_i32_0 : i32, i32
  }
  func.func @transform_3(%arg0: i32) -> (i32, i32) {
    %c0_i32 = arith.constant 0 : i32
    %c0_i32_0 = arith.constant 0 : i32
    return %arg0, %c0_i32 : i32, i32
  }
}

module attributes {stable_mosaic.version = 11 : i64} {
  func.func @_matmul_bias_act_kernel(%arg0: i32, %arg1: memref<16x128xbf16, #tpu.memory_space<vmem>>, %arg2: memref<128x128xbf16, #tpu.memory_space<vmem>>, %arg3: memref<1x128xf32, #tpu.memory_space<vmem>>, %arg4: memref<16x128xf32, #tpu.memory_space<vmem>>) attributes {dimension_semantics = [#tpu.dimension_semantics<parallel>], iteration_bounds = array<i64: 1>, scalar_prefetch = 0 : i64, scratch_operands = 0 : i64, tpu.core_type = #tpu.core_type<tc>, window_params = [{transform_indices = @transform_0, window_bounds = array<i64: 16, 128>}, {pipeline_mode = #tpu.pipeline_mode<synchronous>, transform_indices = @transform_1, window_bounds = array<i64: 128, 128>}, {pipeline_mode = #tpu.pipeline_mode<synchronous>, transform_indices = @transform_2, window_bounds = array<i64: 1, 128>}, {transform_indices = @transform_3, window_bounds = array<i64: 16, 128>}]} {
    %c0 = arith.constant 0 : index
    %c0_0 = arith.constant 0 : index
    %0 = vector.load %arg1[%c0, %c0_0] : memref<16x128xbf16, #tpu.memory_space<vmem>>, vector<16x128xbf16>
    %c0_1 = arith.constant 0 : index
    %c0_2 = arith.constant 0 : index
    %1 = vector.load %arg2[%c0_1, %c0_2] : memref<128x128xbf16, #tpu.memory_space<vmem>>, vector<128x128xbf16>
    %cst = arith.constant dense<0.000000e+00> : vector<16x128xf32>
    %2 = tpu.matmul %0, %1, %cst {dimension_numbers = #tpu.dot_dimension_numbers<[1], [0], [0], [1], [0, 0, 1, 1], [], []>} : vector<16x128xbf16>, vector<128x128xbf16>, vector<16x128xf32> -> vector<16x128xf32>
    %c0_3 = arith.constant 0 : index
    %c0_4 = arith.constant 0 : index
    %3 = vector.load %arg3[%c0_3, %c0_4] : memref<1x128xf32, #tpu.memory_space<vmem>>, vector<1x128xf32>
    %4 = vector.broadcast %3 : vector<1x128xf32> to vector<16x128xf32>
    %5 = arith.addf %2, %4 : vector<16x128xf32>
    %6 = math.tanh %5 : vector<16x128xf32>
    %c0_5 = arith.constant 0 : index
    %c0_6 = arith.constant 0 : index
    %7 = vector.load %arg4[%c0_5, %c0_6] : memref<16x128xf32, #tpu.memory_space<vmem>>, vector<16x128xf32>
    tpu.vector_store %arg4[%c0_5, %c0_6], %6 {strides = array<i32>} : memref<16x128xf32, #tpu.memory_space<vmem>>, vector<16x128xf32>,
    return
  }
  func.func @transform_0(%arg0: i32) -> (i32, i32) {
    %c0_i32 = arith.constant 0 : i32
    %c0_i32_0 = arith.constant 0 : i32
    return %arg0, %c0_i32 : i32, i32
  }
  func.func @transform_1(%arg0: i32) -> (i32, i32) {
    %c0_i32 = arith.constant 0 : i32
    %c0_i32_0 = arith.constant 0 : i32
    %c0_i32_1 = arith.constant 0 : i32
    return %c0_i32, %c0_i32_0 : i32, i32
  }
  func.func @transform_2(%arg0: i32) -> (i32, i32) {
    %c0_i32 = arith.constant 0 : i32
    %c0_i32_0 = arith.constant 0 : i32
    %c0_i32_1 = arith.constant 0 : i32
    return %c0_i32, %c0_i32_0 : i32, i32
  }
  func.func @transform_3(%arg0: i32) -> (i32, i32) {
    %c0_i32 = arith.constant 0 : i32
    %c0_i32_0 = arith.constant 0 : i32
    return %arg0, %c0_i32 : i32, i32
  }
}

module attributes {stable_mosaic.version = 11 : i64} {
  func.func @_matmul_bias_act_kernel(%arg0: i32, %arg1: memref<256x128xbf16, #tpu.memory_space<vmem>>, %arg2: memref<128x128xbf16, #tpu.memory_space<vmem>>, %arg3: memref<1x128xf32, #tpu.memory_space<vmem>>, %arg4: memref<256x128xf32, #tpu.memory_space<vmem>>) attributes {dimension_semantics = [#tpu.dimension_semantics<parallel>], iteration_bounds = array<i64: 2>, scalar_prefetch = 0 : i64, scratch_operands = 0 : i64, tpu.core_type = #tpu.core_type<tc>, window_params = [{transform_indices = @transform_0, window_bounds = array<i64: 256, 128>}, {pipeline_mode = #tpu.pipeline_mode<synchronous>, transform_indices = @transform_1, window_bounds = array<i64: 128, 128>}, {pipeline_mode = #tpu.pipeline_mode<synchronous>, transform_indices = @transform_2, window_bounds = array<i64: 1, 128>}, {transform_indices = @transform_3, window_bounds = array<i64: 256, 128>}]} {
    %c0 = arith.constant 0 : index
    %c0_0 = arith.constant 0 : index
    %0 = vector.load %arg1[%c0, %c0_0] : memref<256x128xbf16, #tpu.memory_space<vmem>>, vector<256x128xbf16>
    %c0_1 = arith.constant 0 : index
    %c0_2 = arith.constant 0 : index
    %1 = vector.load %arg2[%c0_1, %c0_2] : memref<128x128xbf16, #tpu.memory_space<vmem>>, vector<128x128xbf16>
    %cst = arith.constant dense<0.000000e+00> : vector<256x128xf32>
    %2 = tpu.matmul %0, %1, %cst {dimension_numbers = #tpu.dot_dimension_numbers<[1], [0], [0], [1], [0, 0, 1, 1], [], []>} : vector<256x128xbf16>, vector<128x128xbf16>, vector<256x128xf32> -> vector<256x128xf32>
    %c0_3 = arith.constant 0 : index
    %c0_4 = arith.constant 0 : index
    %3 = vector.load %arg3[%c0_3, %c0_4] : memref<1x128xf32, #tpu.memory_space<vmem>>, vector<1x128xf32>
    %4 = vector.broadcast %3 : vector<1x128xf32> to vector<256x128xf32>
    %5 = arith.addf %2, %4 : vector<256x128xf32>
    %cst_5 = arith.constant 0.000000e+00 : f32
    %cst_6 = arith.constant 6.000000e+00 : f32
    %6 = vector.broadcast %cst_5 : f32 to vector<256x128xf32>
    %7 = arith.maximumf %6, %5 : vector<256x128xf32>
    %8 = vector.broadcast %cst_6 : f32 to vector<256x128xf32>
    %9 = arith.minimumf %8, %7 : vector<256x128xf32>
    %c0_7 = arith.constant 0 : index
    %c0_8 = arith.constant 0 : index
    %10 = vector.load %arg4[%c0_7, %c0_8] : memref<256x128xf32, #tpu.memory_space<vmem>>, vector<256x128xf32>
    tpu.vector_store %arg4[%c0_7, %c0_8], %9 {strides = array<i32>} : memref<256x128xf32, #tpu.memory_space<vmem>>, vector<256x128xf32>,
    return
  }
  func.func @transform_0(%arg0: i32) -> (i32, i32) {
    %c0_i32 = arith.constant 0 : i32
    %c0_i32_0 = arith.constant 0 : i32
    return %arg0, %c0_i32 : i32, i32
  }
  func.func @transform_1(%arg0: i32) -> (i32, i32) {
    %c0_i32 = arith.constant 0 : i32
    %c0_i32_0 = arith.constant 0 : i32
    %c0_i32_1 = arith.constant 0 : i32
    return %c0_i32, %c0_i32_0 : i32, i32
  }
  func.func @transform_2(%arg0: i32) -> (i32, i32) {
    %c0_i32 = arith.constant 0 : i32
    %c0_i32_0 = arith.constant 0 : i32
    %c0_i32_1 = arith.constant 0 : i32
    return %c0_i32, %c0_i32_0 : i32, i32
  }
  func.func @transform_3(%arg0: i32) -> (i32, i32) {
    %c0_i32 = arith.constant 0 : i32
    %c0_i32_0 = arith.constant 0 : i32
    return %arg0, %c0_i32 : i32, i32
  }
}

module attributes {stable_mosaic.version = 11 : i64} {
  func.func @_matmul_bias_act_kernel(%arg0: i32, %arg1: memref<256x128xbf16, #tpu.memory_space<vmem>>, %arg2: memref<128x128xbf16, #tpu.memory_space<vmem>>, %arg3: memref<1x128xf32, #tpu.memory_space<vmem>>, %arg4: memref<256x128xf32, #tpu.memory_space<vmem>>) attributes {dimension_semantics = [#tpu.dimension_semantics<parallel>], iteration_bounds = array<i64: 2>, scalar_prefetch = 0 : i64, scratch_operands = 0 : i64, tpu.core_type = #tpu.core_type<tc>, window_params = [{transform_indices = @transform_0, window_bounds = array<i64: 256, 128>}, {pipeline_mode = #tpu.pipeline_mode<synchronous>, transform_indices = @transform_1, window_bounds = array<i64: 128, 128>}, {pipeline_mode = #tpu.pipeline_mode<synchronous>, transform_indices = @transform_2, window_bounds = array<i64: 1, 128>}, {transform_indices = @transform_3, window_bounds = array<i64: 256, 128>}]} {
    %c0 = arith.constant 0 : index
    %c0_0 = arith.constant 0 : index
    %0 = vector.load %arg1[%c0, %c0_0] : memref<256x128xbf16, #tpu.memory_space<vmem>>, vector<256x128xbf16>
    %c0_1 = arith.constant 0 : index
    %c0_2 = arith.constant 0 : index
    %1 = vector.load %arg2[%c0_1, %c0_2] : memref<128x128xbf16, #tpu.memory_space<vmem>>, vector<128x128xbf16>
    %cst = arith.constant dense<0.000000e+00> : vector<256x128xf32>
    %2 = tpu.matmul %0, %1, %cst {dimension_numbers = #tpu.dot_dimension_numbers<[1], [0], [0], [1], [0, 0, 1, 1], [], []>} : vector<256x128xbf16>, vector<128x128xbf16>, vector<256x128xf32> -> vector<256x128xf32>
    %c0_3 = arith.constant 0 : index
    %c0_4 = arith.constant 0 : index
    %3 = vector.load %arg3[%c0_3, %c0_4] : memref<1x128xf32, #tpu.memory_space<vmem>>, vector<1x128xf32>
    %4 = vector.broadcast %3 : vector<1x128xf32> to vector<256x128xf32>
    %5 = arith.addf %2, %4 : vector<256x128xf32>
    %cst_5 = arith.constant 0.000000e+00 : f32
    %cst_6 = arith.constant 6.000000e+00 : f32
    %6 = vector.broadcast %cst_5 : f32 to vector<256x128xf32>
    %7 = arith.maximumf %6, %5 : vector<256x128xf32>
    %8 = vector.broadcast %cst_6 : f32 to vector<256x128xf32>
    %9 = arith.minimumf %8, %7 : vector<256x128xf32>
    %10 = arith.negf %9 : vector<256x128xf32>
    %11 = math.exp %10 : vector<256x128xf32>
    %cst_7 = arith.constant 1.000000e+00 : f32
    %12 = vector.broadcast %cst_7 : f32 to vector<256x128xf32>
    %13 = arith.addf %12, %11 : vector<256x128xf32>
    %14 = arith.divf %12, %13 : vector<256x128xf32>
    %c0_8 = arith.constant 0 : index
    %c0_9 = arith.constant 0 : index
    %15 = vector.load %arg4[%c0_8, %c0_9] : memref<256x128xf32, #tpu.memory_space<vmem>>, vector<256x128xf32>
    tpu.vector_store %arg4[%c0_8, %c0_9], %14 {strides = array<i32>} : memref<256x128xf32, #tpu.memory_space<vmem>>, vector<256x128xf32>,
    return
  }
  func.func @transform_0(%arg0: i32) -> (i32, i32) {
    %c0_i32 = arith.constant 0 : i32
    %c0_i32_0 = arith.constant 0 : i32
    return %arg0, %c0_i32 : i32, i32
  }
  func.func @transform_1(%arg0: i32) -> (i32, i32) {
    %c0_i32 = arith.constant 0 : i32
    %c0_i32_0 = arith.constant 0 : i32
    %c0_i32_1 = arith.constant 0 : i32
    return %c0_i32, %c0_i32_0 : i32, i32
  }
  func.func @transform_2(%arg0: i32) -> (i32, i32) {
    %c0_i32 = arith.constant 0 : i32
    %c0_i32_0 = arith.constant 0 : i32
    %c0_i32_1 = arith.constant 0 : i32
    return %c0_i32, %c0_i32_0 : i32, i32
  }
  func.func @transform_3(%arg0: i32) -> (i32, i32) {
    %c0_i32 = arith.constant 0 : i32
    %c0_i32_0 = arith.constant 0 : i32
    return %arg0, %c0_i32 : i32, i32
  }
}

</mosaic_0001>

<llo_original>
// kernel: harm_attn_forward.7
$region0: #{harm_attn_forward.7}
  #allocation0 [shape = 'u32[]', space=smem, size = 0x4, offset = 0x4, fixed_abs, tag = 'smem constant byte address 0x4 - core index']
  #allocation1 [shape = 'u32[144,128]{1,0:T(1,128)}', space=vmem, size = 0x12000, scoped, tag = 'internal scratch']
  %s0 = inlined_call_operand.vmem [shape: bf16[128,128], index: 0, kind: input, shape index: {}]
  %s1 = inlined_call_operand.vmem [shape: bf16[128,128], index: 1, kind: input, shape index: {}]
  %s2 = inlined_call_operand.vmem [shape: f32[1,128], index: 2, kind: input, shape index: {}]
  %s3 = inlined_call_operand.vmem [shape: f32[128,128], index: 3, kind: output, shape index: {}]
  %s4 = sld [smem:[#allocation0]]
  $region45: #{harm_attn_forward.7} parent=0
    _
  %s6 = ssub.s32 1, %s4
  %s7 = scalar_select 0, %s6, %s4
  loop: start=0, step=1, limit=4
  $region2: #{harm_attn_forward.7} parent=0 // loop_pre_header
    _
  $region3: #{harm_attn_forward.7} parent=0 // loop_header
    %s9 = sphi 0, %s13
    %p10 = scmp.ge.s32.totalorder %s9, 4
    %s19 = sphi 0, %s21
    %s22 = sphi 0, %s19
    %s23 = sphi 0, %s22
    %s39 = sphi 0, %s23
    %s43 = sphi 0, %s43
    %s45 = sphi 0, %s43
    %s46 = sphi 0, %s45
    %s60 = sphi 0, %s46
    %s64 = sphi 0, %s64
    %s66 = sphi 0, %s64
    %s67 = sphi 0, %s66
    %s81 = sphi 0, %s67
    %s87 = sphi 0, %s89
    %s90 = sphi 0, %s87
    %s91 = sphi 0, %s90
    %s107 = sphi 0, %s91
  $region4: #{harm_attn_forward.7} parent=0 // loop_header_branch
    %12 = sbr.rel (%p10) target = $region8
  $region5: #{harm_attn_forward.7} parent=0 // loop_body
    %s14 = ssub.s32 %s9, 1
    %s15 = ssub.s32 %s9, 2
    %s16 = sadd.s32 %s9, 1
    %s17 = ssub.s32 %s9, %s16
    %p18 = scmp.eq.s32.totalorder %s17, 0
    %s20 = sadd.s32 %s19, 1
    %s21 = scalar_select %p18, %s19, %s20
    %p24 = pneg %p18
    %p25 = scmp.eq.s32.totalorder %s9, 1
    %p26 = por %p24, %p25
    %p27 = scmp.ne.s32.totalorder %s19, %s22
    %p28 = scmp.eq.s32.totalorder %s9, 0
    %p29 = por %p27, %p28
    %p30 = scmp.ne.s32.totalorder %s19, %s22
    %p31 = scmp.eq.s32.totalorder %s14, 1
    %p32 = por %p30, %p31
    %p33 = scmp.ne.s32.totalorder %s22, %s23
    %p34 = scmp.eq.s32.totalorder %s14, 0
    %p35 = por %p33, %p34
    %p36 = scmp.ne.s32.totalorder %s22, %s23
    %p37 = scmp.eq.s32.totalorder %s15, 1
    %p38 = por %p36, %p37
    %p40 = scmp.ne.s32.totalorder %s23, %s39
    %p41 = scmp.eq.s32.totalorder %s15, 0
    %p42 = por %p40, %p41
    %s44 = sadd.s32 %s43, 1
    %p47 = scmp.eq.s32.totalorder %s9, 1
    %p48 = scmp.ne.s32.totalorder %s43, %s45
    %p49 = scmp.eq.s32.totalorder %s9, 0
    %p50 = por %p48, %p49
    %p51 = scmp.ne.s32.totalorder %s43, %s45
    %p52 = scmp.eq.s32.totalorder %s14, 1
    %p53 = por %p51, %p52
    %p54 = scmp.ne.s32.totalorder %s45, %s46
    %p55 = scmp.eq.s32.totalorder %s14, 0
    %p56 = por %p54, %p55
    %p57 = scmp.ne.s32.totalorder %s45, %s46
    %p58 = scmp.eq.s32.totalorder %s15, 1
    %p59 = por %p57, %p58
    %p61 = scmp.ne.s32.totalorder %s46, %s60
    %p62 = scmp.eq.s32.totalorder %s15, 0
    %p63 = por %p61, %p62
    %s65 = sadd.s32 %s64, 1
    %p68 = scmp.eq.s32.totalorder %s9, 1
    %p69 = scmp.ne.s32.totalorder %s64, %s66
    %p70 = scmp.eq.s32.totalorder %s9, 0
    %p71 = por %p69, %p70
    %p72 = scmp.ne.s32.totalorder %s64, %s66
    %p73 = scmp.eq.s32.totalorder %s14, 1
    %p74 = por %p72, %p73
    %p75 = scmp.ne.s32.totalorder %s66, %s67
    %p76 = scmp.eq.s32.totalorder %s14, 0
    %p77 = por %p75, %p76
    %p78 = scmp.ne.s32.totalorder %s66, %s67
    %p79 = scmp.eq.s32.totalorder %s15, 1
    %p80 = por %p78, %p79
    %p82 = scmp.ne.s32.totalorder %s67, %s81
    %p83 = scmp.eq.s32.totalorder %s15, 0
    %p84 = por %p82, %p83
    %s85 = ssub.s32 %s9, %s16
    %p86 = scmp.eq.s32.totalorder %s85, 0
    %s88 = sadd.s32 %s87, 1
    %s89 = scalar_select %p86, %s87, %s88
    %p92 = pneg %p86
    %p93 = scmp.eq.s32.totalorder %s9, 1
    %p94 = por %p92, %p93
    %p95 = scmp.ne.s32.totalorder %s87, %s90
    %p96 = scmp.eq.s32.totalorder %s9, 0
    %p97 = por %p95, %p96
    %p98 = scmp.ne.s32.totalorder %s87, %s90
    %p99 = scmp.eq.s32.totalorder %s14, 1
    %p100 = por %p98, %p99
    %p101 = scmp.ne.s32.totalorder %s90, %s91
    %p102 = scmp.eq.s32.totalorder %s14, 0
    %p103 = por %p101, %p102
    %p104 = scmp.ne.s32.totalorder %s90, %s91
    %p105 = scmp.eq.s32.totalorder %s15, 1
    %p106 = por %p104, %p105
    %p108 = scmp.ne.s32.totalorder %s91, %s107
    %p109 = scmp.eq.s32.totalorder %s15, 0
    %p110 = por %p108, %p109
    %p111 = scmp.le.s32.totalorder 1, %s9
    %p112 = scmp.lt.s32.totalorder %s9, 3
    %p113 = pnand %p111, %p112
    %p114 = pneg %p113
    // Predicated region
    $region9: #{harm_attn_forward.7} parent=5 // pred_check
      _
    $region10: #{harm_attn_forward.7} parent=5 // pred_check_branch
      %116 = sbr.rel (%p113) target = $region12
    $region11: #{harm_attn_forward.7} parent=5 // pred_region
      %s117 = ssub.s32 %s9, 1
      // Predicated region
      $region13: #{harm_attn_forward.7} parent=11 // pred_check
        %p118 = pneg %p56
      $region14: #{harm_attn_forward.7} parent=11 // pred_check_branch
        %120 = sbr.rel (%p118) target = $region16
      $region15: #{harm_attn_forward.7} parent=11 // pred_region
        _
      $region16: #{harm_attn_forward.7} parent=11 // pred_fallthru
        _
      // Predicated region
      $region17: #{harm_attn_forward.7} parent=11 // pred_check
        %p121 = pneg %p77
      $region18: #{harm_attn_forward.7} parent=11 // pred_check_branch
        %123 = sbr.rel (%p121) target = $region20
      $region19: #{harm_attn_forward.7} parent=11 // pred_region
        _
      $region20: #{harm_attn_forward.7} parent=11 // pred_fallthru
        _
    $region12: #{harm_attn_forward.7} parent=5 // pred_fallthru
      _
    %p124 = scmp.lt.s32.totalorder %s9, 2
    // Predicated region
    $region21: #{harm_attn_forward.7} parent=5 // pred_check
      %p125 = pneg %p124
    $region22: #{harm_attn_forward.7} parent=5 // pred_check_branch
      %127 = sbr.rel (%p125) target = $region24
    $region23: #{harm_attn_forward.7} parent=5 // pred_region
      // Predicated region
      $region25: #{harm_attn_forward.7} parent=23 // pred_check
        %p128 = pneg %p29
      $region26: #{harm_attn_forward.7} parent=23 // pred_check_branch
        %130 = sbr.rel (%p128) target = $region28
      $region27: #{harm_attn_forward.7} parent=23 // pred_region
        %s131 = smul.u32 8, %s9
        %p132 = scmp.lt.s32.totalorder %s131, 15
        %s133 = scalar_select %p132, %s131, 15
        %s134 = smul.addr %s133, 4
        %s135 = scalar_lea.vmem %s0, %s134
        %s136 = smul.u32 8, %s9
      $region28: #{harm_attn_forward.7} parent=23 // pred_fallthru
        _
    $region24: #{harm_attn_forward.7} parent=5 // pred_fallthru
      _
    %p137 = scmp.le.s32.totalorder 1, %s9
    %p138 = scmp.lt.s32.totalorder %s9, 3
    %p139 = pnand %p137, %p138
    %p140 = pneg %p139
    // Predicated region
    $region29: #{harm_attn_forward.7} parent=5 // pred_check
      _
    $region30: #{harm_attn_forward.7} parent=5 // pred_check_branch
      %142 = sbr.rel (%p139) target = $region32
    $region31: #{harm_attn_forward.7} parent=5 // pred_region
      %s143 = ssub.s32 %s9, 1
      %s144 = smul.u32 8, %s14
      %p145 = scmp.lt.s32.totalorder %s144, 15
      %s146 = scalar_select %p145, %s144, 15
      %s147 = smul.addr %s146, 4
      %s148 = scalar_lea.vmem %s0, %s147
      %p149 = pneg %p35
      %p150 = pneg %p32
      %p151 = pneg %p56
      %p152 = pneg %p53
      %p153 = pneg %p77
      %p154 = pneg %p74
      %p155 = pneg %p103
      %p156 = pneg %p100
      %s157 = smul.u32 8, %s14
      %p158 = scmp.lt.s32.totalorder %s157, 15
      %s159 = scalar_select %p158, %s157, 15
      %s160 = smul.addr %s159, 8
      %s161 = scalar_lea.vmem %s3, %s160
      %s162 = smul.u32 8, %s14
      %p163 = scmp.lt.s32.totalorder %s162, 15
      %s164 = scalar_select %p163, %s162, 15
      %s165 = smul.addr %s164, 4
      %s166 = scalar_lea.vmem %s0, %s165
      %s167 = smul.u32 8, %s14
      %s168 = smul.u32 8, %s14
      %p169 = scmp.lt.s32.totalorder %s168, 15
      %s170 = scalar_select %p169, %s168, 15
      %s171 = smul.addr %s170, 8
      %s172 = scalar_lea.vmem %s3, %s171
      %s173 = smul.u32 8, %s14
      %v175 = vld [vmem:[%s166] sm:$0xf]
      %v176 = vld [vmem:[%s166 + $0x4] sm:$0xf]
      %v177 = vld [vmem:[%s166 + $0x8] sm:$0xf]
      %v178 = vld [vmem:[%s166 + $0xc] sm:$0xf]
      %v179 = vld [vmem:[%s166 + $0x10] sm:$0xf]
      %v180 = vld [vmem:[%s166 + $0x14] sm:$0xf]
      %v181 = vld [vmem:[%s166 + $0x18] sm:$0xf]
      %v182 = vld [vmem:[%s166 + $0x1c] sm:$0xf]
      %v183 = vld [vmem:[%s1] sm:$0xf]
      %v184 = vld [vmem:[%s1 + $0x4] sm:$0xf]
      %v185 = vld [vmem:[%s1 + $0x8] sm:$0xf]
      %v186 = vld [vmem:[%s1 + $0xc] sm:$0xf]
      %v187 = vld [vmem:[%s1 + $0x10] sm:$0xf]
      %v188 = vld [vmem:[%s1 + $0x14] sm:$0xf]
      %v189 = vld [vmem:[%s1 + $0x18] sm:$0xf]
      %v190 = vld [vmem:[%s1 + $0x1c] sm:$0xf]
      %v191 = vld [vmem:[%s1 + $0x20] sm:$0xf]
      %v192 = vld [vmem:[%s1 + $0x24] sm:$0xf]
      %v193 = vld [vmem:[%s1 + $0x28] sm:$0xf]
      %v194 = vld [vmem:[%s1 + $0x2c] sm:$0xf]
      %v195 = vld [vmem:[%s1 + $0x30] sm:$0xf]
      %v196 = vld [vmem:[%s1 + $0x34] sm:$0xf]
      %v197 = vld [vmem:[%s1 + $0x38] sm:$0xf]
      %v198 = vld [vmem:[%s1 + $0x3c] sm:$0xf]
      %v199 = vld [vmem:[%s2] sm:$0x1]
      %v201 = vlaneseq
      %v202 = vshrl.u32 %v201, 7
      %v203 = vsub.s32 0, %v202
      %v204 = vrot.slane %v199, %v203
      %v214 = vunpack.c.l.b16 %v175
      %v215 = vunpack.c.l.b16 %v176
      %v216 = vunpack.c.l.b16 %v177
      %v217 = vunpack.c.l.b16 %v178
      %v218 = vunpack.c.l.b16 %v179
      %v219 = vunpack.c.l.b16 %v180
      %v220 = vunpack.c.l.b16 %v181
      %v221 = vunpack.c.l.b16 %v182
      %v222 = vpack.c.b16 %v215, %v214
      %v223 = vpack.c.b16 %v217, %v216
      %v224 = vpack.c.b16 %v219, %v218
      %v225 = vpack.c.b16 %v221, %v220
      %v246 = vunpack.c.l.b16 %v183
      %v247 = vunpack.c.l.b16 %v184
      %v248 = vunpack.c.l.b16 %v185
      %v249 = vunpack.c.l.b16 %v186
      %v250 = vunpack.c.l.b16 %v187
      %v251 = vunpack.c.l.b16 %v188
      %v252 = vunpack.c.l.b16 %v189
      %v253 = vunpack.c.l.b16 %v190
      %v254 = vunpack.c.l.b16 %v191
      %v255 = vunpack.c.l.b16 %v192
      %v256 = vunpack.c.l.b16 %v193
      %v257 = vunpack.c.l.b16 %v194
      %v258 = vunpack.c.l.b16 %v195
      %v259 = vunpack.c.l.b16 %v196
      %v260 = vunpack.c.l.b16 %v197
      %v261 = vunpack.c.l.b16 %v198
      %v262 = vpack.c.b16 %v247, %v246
      %v263 = vpack.c.b16 %v249, %v248
      %v264 = vpack.c.b16 %v251, %v250
      %v265 = vpack.c.b16 %v253, %v252
      %v266 = vpack.c.b16 %v255, %v254
      %v267 = vpack.c.b16 %v257, %v256
      %v268 = vpack.c.b16 %v259, %v258
      %v269 = vpack.c.b16 %v261, %v260
      %278 = vmatprep.subr.bf16.mxu0 0
      %279 = vmatpush1.bf16.msra.mxu0 %v262
      %280 = vmatprep.subr.bf16.mxu0 0
      %281 = vmatpush1.bf16.msra.mxu0 %v263
      %282 = vmatprep.subr.bf16.mxu0 0
      %283 = vmatpush1.bf16.msra.mxu0 %v264
      %284 = vmatprep.subr.bf16.mxu0 0
      %285 = vmatpush1.bf16.msra.mxu0 %v265
      %286 = vmatprep.subr.bf16.mxu0 0
      %287 = vmatpush1.bf16.msra.mxu0 %v266
      %288 = vmatprep.subr.bf16.mxu0 0
      %289 = vmatpush1.bf16.msra.mxu0 %v267
      %290 = vmatprep.subr.bf16.mxu0 0
      %291 = vmatpush1.bf16.msra.mxu0 %v268
      %292 = vmatprep.subr.bf16.mxu0 0
      %293 = vmatpush1.bf16.msra.mxu0 %v269
      %294 = vmatprep.subr.bf16.mxu0 0
      %295 = vmatpush1.bf16.msra.mxu0 0
      %296 = vmatprep.subr.bf16.mxu0 0
      %297 = vmatpush1.bf16.msra.mxu0 0
      %298 = vmatprep.subr.bf16.mxu0 0
      %299 = vmatpush1.bf16.msra.mxu0 0
      %300 = vmatprep.subr.bf16.mxu0 0
      %301 = vmatpush1.bf16.msra.mxu0 0
      %302 = vmatprep.subr.bf16.mxu0 0
      %303 = vmatpush1.bf16.msra.mxu0 0
      %304 = vmatprep.subr.bf16.mxu0 0
      %305 = vmatpush1.bf16.msra.mxu0 0
      %306 = vmatprep.subr.bf16.mxu0 0
      %307 = vmatpush1.bf16.msra.mxu0 0
      %308 = vmatprep.subr.bf16.mxu0 0
      %309 = vmatpush1.bf16.msra.mxu0 0
      %310 = vmatprep.mubr.bf16.mxu0 0
      %311 = vmatmul.mubr.bf16.gmra.mrb[0].mxu0 %v222
      %v312 = vpop.f32.mrb[0].mxu0
      %v313 = vadd.f32 %v204, %v312
      %v314 = vpop.f32.mrb[0].mxu0
      %v315 = vpop.f32.mrb[0].mxu0
      %v316 = vadd.f32 %v204, %v315
      %v317 = vpop.f32.mrb[0].mxu0
      %318 = vmatprep.mubr.bf16.mxu0 0
      %319 = vmatmul.mubr.bf16.gmra.mrb[0].mxu0 %v223
      %v320 = vpop.f32.mrb[0].mxu0
      %v321 = vadd.f32 %v204, %v320
      %v322 = vpop.f32.mrb[0].mxu0
      %v323 = vpop.f32.mrb[0].mxu0
      %v324 = vadd.f32 %v204, %v323
      %v325 = vpop.f32.mrb[0].mxu0
      %326 = vmatprep.mubr.bf16.mxu0 0
      %327 = vmatmul.mubr.bf16.gmra.mrb[0].mxu0 %v224
      %v328 = vpop.f32.mrb[0].mxu0
      %v329 = vadd.f32 %v204, %v328
      %v330 = vpop.f32.mrb[0].mxu0
      %v331 = vpop.f32.mrb[0].mxu0
      %v332 = vadd.f32 %v204, %v331
      %v333 = vpop.f32.mrb[0].mxu0
      %334 = vmatprep.mubr.bf16.mxu0 0
      %335 = vmatmul.mubr.bf16.gmra.mrb[0].mxu0 %v225
      %v336 = vpop.f32.mrb[0].mxu0
      %v337 = vadd.f32 %v204, %v336
      %v338 = vpop.f32.mrb[0].mxu0
      %v339 = vpop.f32.mrb[0].mxu0
      %v340 = vadd.f32 %v204, %v339
      %v341 = vpop.f32.mrb[0].mxu0
      %342 = vdwg.mxu0
      %v343 = vmax.f32 %v313, 0.0
      %v344 = vmax.f32 %v316, 0.0
      %v345 = vmax.f32 %v321, 0.0
      %v346 = vmax.f32 %v324, 0.0
      %v347 = vmax.f32 %v329, 0.0
      %v348 = vmax.f32 %v332, 0.0
      %v349 = vmax.f32 %v337, 0.0
      %v350 = vmax.f32 %v340, 0.0
      %v351 = vmin.f32 %v343, 6.0
      %v352 = vmin.f32 %v344, 6.0
      %v353 = vmin.f32 %v345, 6.0
      %v354 = vmin.f32 %v346, 6.0
      %v355 = vmin.f32 %v347, 6.0
      %v356 = vmin.f32 %v348, 6.0
      %v357 = vmin.f32 %v349, 6.0
      %v358 = vmin.f32 %v350, 6.0
      %359 = vst [vmem:[%s172] sm:$0xff] %v351
      %360 = vst [vmem:[%s172 + $0x8] sm:$0xff] %v352
      %361 = vst [vmem:[%s172 + $0x10] sm:$0xff] %v353
      %362 = vst [vmem:[%s172 + $0x18] sm:$0xff] %v354
      %363 = vst [vmem:[%s172 + $0x20] sm:$0xff] %v355
      %364 = vst [vmem:[%s172 + $0x28] sm:$0xff] %v356
      %365 = vst [vmem:[%s172 + $0x30] sm:$0xff] %v357
      %366 = vst [vmem:[%s172 + $0x38] sm:$0xff] %v358
      %s367 = smul.u32 8, %s14
      %p368 = scmp.lt.s32.totalorder %s367, 15
      %s369 = scalar_select %p368, %s367, 15
      %s370 = smul.addr %s369, 8
      %s371 = scalar_lea.vmem %s3, %s370
      // Predicated region
      $region33: #{harm_attn_forward.7} parent=31 // pred_check
        %p372 = pneg %p100
      $region34: #{harm_attn_forward.7} parent=31 // pred_check_branch
        %374 = sbr.rel (%p372) target = $region36
      $region35: #{harm_attn_forward.7} parent=31 // pred_region
        %s375 = smul.u32 8, %s14
      $region36: #{harm_attn_forward.7} parent=31 // pred_fallthru
        _
    $region32: #{harm_attn_forward.7} parent=5 // pred_fallthru
      _
    %p376 = scmp.le.s32.totalorder 2, %s9
    // Predicated region
    $region37: #{harm_attn_forward.7} parent=5 // pred_check
      %p377 = pneg %p376
    $region38: #{harm_attn_forward.7} parent=5 // pred_check_branch
      %379 = sbr.rel (%p377) target = $region40
    $region39: #{harm_attn_forward.7} parent=5 // pred_region
      %s380 = ssub.s32 %s9, 2
      // Predicated region
      $region41: #{harm_attn_forward.7} parent=39 // pred_check
        %p381 = pneg %p106
      $region42: #{harm_attn_forward.7} parent=39 // pred_check_branch
        %383 = sbr.rel (%p381) target = $region44
      $region43: #{harm_attn_forward.7} parent=39 // pred_region
        %s384 = smul.u32 8, %s15
        %p385 = scmp.lt.s32.totalorder %s384, 15
        %s386 = scalar_select %p385, %s384, 15
        %s387 = smul.addr %s386, 8
        %s388 = scalar_lea.vmem %s3, %s387
      $region44: #{harm_attn_forward.7} parent=39 // pred_fallthru
        _
    $region40: #{harm_attn_forward.7} parent=5 // pred_fallthru
      _
  $region6: #{harm_attn_forward.7} parent=0 // loop_footer
    %s13 = sadd.s32 1, %s9
  $region7: #{harm_attn_forward.7} parent=0 // loop_footer_branch
    %8 = sbr.rel target = $region3
  $region8: #{harm_attn_forward.7} parent=0 // loop_exit
    _

// kernel: harm_attn_forward.9
$region0: #{harm_attn_forward.9}
  #allocation0 [shape = 'u32[]', space=smem, size = 0x4, offset = 0x4, fixed_abs, tag = 'smem constant byte address 0x4 - core index']
  #allocation1 [shape = 'u32[144,128]{1,0:T(1,128)}', space=vmem, size = 0x12000, scoped, tag = 'internal scratch']
  %s0 = inlined_call_operand.vmem [shape: bf16[16,128], index: 0, kind: input, shape index: {}]
  %s1 = inlined_call_operand.vmem [shape: bf16[128,128], index: 1, kind: input, shape index: {}]
  %s2 = inlined_call_operand.vmem [shape: f32[1,128], index: 2, kind: input, shape index: {}]
  %s3 = inlined_call_operand.vmem [shape: f32[16,128], index: 3, kind: output, shape index: {}]
  %s4 = sld [smem:[#allocation0]]
  $region22: #{harm_attn_forward.9} parent=0
    _
  %s6 = ssub.s32 1, %s4
  %s7 = scalar_select 0, %s6, %s4
  // Predicated region
  $region2: #{harm_attn_forward.9} parent=0 // pred_check
    _
  $region3: #{harm_attn_forward.9} parent=0 // pred_check_branch
    %9 = sbr.rel (0) target = $region5
  $region4: #{harm_attn_forward.9} parent=0 // pred_region
    _
  $region5: #{harm_attn_forward.9} parent=0 // pred_fallthru
    _
  // Predicated region
  $region6: #{harm_attn_forward.9} parent=0 // pred_check
    _
  $region7: #{harm_attn_forward.9} parent=0 // pred_check_branch
    %11 = sbr.rel (0) target = $region9
  $region8: #{harm_attn_forward.9} parent=0 // pred_region
    _
  $region9: #{harm_attn_forward.9} parent=0 // pred_fallthru
    _
  // Predicated region
  $region10: #{harm_attn_forward.9} parent=0 // pred_check
    _
  $region11: #{harm_attn_forward.9} parent=0 // pred_check_branch
    %13 = sbr.rel (0) target = $region13
  $region12: #{harm_attn_forward.9} parent=0 // pred_region
    _
  $region13: #{harm_attn_forward.9} parent=0 // pred_fallthru
    _
  %v15 = vld [vmem:[%s0] sm:$0xf]
  %v16 = vld [vmem:[%s0 + $0x4] sm:$0xf]
  %v17 = vld [vmem:[%s1] sm:$0xf]
  %v18 = vld [vmem:[%s1 + $0x4] sm:$0xf]
  %v19 = vld [vmem:[%s1 + $0x8] sm:$0xf]
  %v20 = vld [vmem:[%s1 + $0xc] sm:$0xf]
  %v21 = vld [vmem:[%s1 + $0x10] sm:$0xf]
  %v22 = vld [vmem:[%s1 + $0x14] sm:$0xf]
  %v23 = vld [vmem:[%s1 + $0x18] sm:$0xf]
  %v24 = vld [vmem:[%s1 + $0x1c] sm:$0xf]
  %v25 = vld [vmem:[%s1 + $0x20] sm:$0xf]
  %v26 = vld [vmem:[%s1 + $0x24] sm:$0xf]
  %v27 = vld [vmem:[%s1 + $0x28] sm:$0xf]
  %v28 = vld [vmem:[%s1 + $0x2c] sm:$0xf]
  %v29 = vld [vmem:[%s1 + $0x30] sm:$0xf]
  %v30 = vld [vmem:[%s1 + $0x34] sm:$0xf]
  %v31 = vld [vmem:[%s1 + $0x38] sm:$0xf]
  %v32 = vld [vmem:[%s1 + $0x3c] sm:$0xf]
  %v33 = vld [vmem:[%s2] sm:$0x1]
  %v35 = vlaneseq
  %v36 = vshrl.u32 %v35, 7
  %v37 = vsub.s32 0, %v36
  %v38 = vrot.slane %v33, %v37
  %v42 = vunpack.c.l.b16 %v15
  %v43 = vunpack.c.l.b16 %v16
  %v44 = vpack.c.b16 %v43, %v42
  %v62 = vunpack.c.l.b16 %v17
  %v63 = vunpack.c.l.b16 %v18
  %v64 = vunpack.c.l.b16 %v19
  %v65 = vunpack.c.l.b16 %v20
  %v66 = vunpack.c.l.b16 %v21
  %v67 = vunpack.c.l.b16 %v22
  %v68 = vunpack.c.l.b16 %v23
  %v69 = vunpack.c.l.b16 %v24
  %v70 = vunpack.c.l.b16 %v25
  %v71 = vunpack.c.l.b16 %v26
  %v72 = vunpack.c.l.b16 %v27
  %v73 = vunpack.c.l.b16 %v28
  %v74 = vunpack.c.l.b16 %v29
  %v75 = vunpack.c.l.b16 %v30
  %v76 = vunpack.c.l.b16 %v31
  %v77 = vunpack.c.l.b16 %v32
  %v78 = vpack.c.b16 %v63, %v62
  %v79 = vpack.c.b16 %v65, %v64
  %v80 = vpack.c.b16 %v67, %v66
  %v81 = vpack.c.b16 %v69, %v68
  %v82 = vpack.c.b16 %v71, %v70
  %v83 = vpack.c.b16 %v73, %v72
  %v84 = vpack.c.b16 %v75, %v74
  %v85 = vpack.c.b16 %v77, %v76
  %94 = vmatprep.subr.bf16.mxu0 0
  %95 = vmatpush1.bf16.msra.mxu0 %v78
  %96 = vmatprep.subr.bf16.mxu0 0
  %97 = vmatpush1.bf16.msra.mxu0 %v79
  %98 = vmatprep.subr.bf16.mxu0 0
  %99 = vmatpush1.bf16.msra.mxu0 %v80
  %100 = vmatprep.subr.bf16.mxu0 0
  %101 = vmatpush1.bf16.msra.mxu0 %v81
  %102 = vmatprep.subr.bf16.mxu0 0
  %103 = vmatpush1.bf16.msra.mxu0 %v82
  %104 = vmatprep.subr.bf16.mxu0 0
  %105 = vmatpush1.bf16.msra.mxu0 %v83
  %106 = vmatprep.subr.bf16.mxu0 0
  %107 = vmatpush1.bf16.msra.mxu0 %v84
  %108 = vmatprep.subr.bf16.mxu0 0
  %109 = vmatpush1.bf16.msra.mxu0 %v85
  %110 = vmatprep.subr.bf16.mxu0 0
  %111 = vmatpush1.bf16.msra.mxu0 0
  %112 = vmatprep.subr.bf16.mxu0 0
  %113 = vmatpush1.bf16.msra.mxu0 0
  %114 = vmatprep.subr.bf16.mxu0 0
  %115 = vmatpush1.bf16.msra.mxu0 0
  %116 = vmatprep.subr.bf16.mxu0 0
  %117 = vmatpush1.bf16.msra.mxu0 0
  %118 = vmatprep.subr.bf16.mxu0 0
  %119 = vmatpush1.bf16.msra.mxu0 0
  %120 = vmatprep.subr.bf16.mxu0 0
  %121 = vmatpush1.bf16.msra.mxu0 0
  %122 = vmatprep.subr.bf16.mxu0 0
  %123 = vmatpush1.bf16.msra.mxu0 0
  %124 = vmatprep.subr.bf16.mxu0 0
  %125 = vmatpush1.bf16.msra.mxu0 0
  %126 = vmatprep.mubr.bf16.mxu0 0
  %127 = vmatmul.mubr.bf16.gmra.mrb[0].mxu0 %v44
  %v128 = vpop.f32.mrb[0].mxu0
  %v129 = vadd.f32 %v38, %v128
  %v130 = vpop.f32.mrb[0].mxu0
  %v131 = vpop.f32.mrb[0].mxu0
  %v132 = vadd.f32 %v38, %v131
  %v133 = vpop.f32.mrb[0].mxu0
  %134 = vdwg.mxu0
  %v135 = vmax.f32 %v129, 0.0
  %v136 = vmax.f32 %v132, 0.0
  %v137 = vmin.f32 %v135, 6.0
  %v138 = vmin.f32 %v136, 6.0
  %139 = vst [vmem:[%s3] sm:$0xff] %v137
  %140 = vst [vmem:[%s3 + $0x8] sm:$0xff] %v138
  // Predicated region
  $region14: #{harm_attn_forward.9} parent=0 // pred_check
    _
  $region15: #{harm_attn_forward.9} parent=0 // pred_check_branch
    %142 = sbr.rel (0) target = $region17
  $region16: #{harm_attn_forward.9} parent=0 // pred_region
    _
  $region17: #{harm_attn_forward.9} parent=0 // pred_fallthru
    _
  // Predicated region
  $region18: #{harm_attn_forward.9} parent=0 // pred_check
    _
  $region19: #{harm_attn_forward.9} parent=0 // pred_check_branch
    %144 = sbr.rel (0) target = $region21
  $region20: #{harm_attn_forward.9} parent=0 // pred_region
    _
  $region21: #{harm_attn_forward.9} parent=0 // pred_fallthru
    _

// kernel: harm_attn_forward.6
$region0: #{harm_attn_forward.6}
  #allocation0 [shape = 'u32[]', space=smem, size = 0x4, offset = 0x4, fixed_abs, tag = 'smem constant byte address 0x4 - core index']
  #allocation1 [shape = 'u32[144,128]{1,0:T(1,128)}', space=vmem, size = 0x12000, scoped, tag = 'internal scratch']
  %s0 = inlined_call_operand.vmem [shape: bf16[16,128], index: 0, kind: input, shape index: {}]
  %s1 = inlined_call_operand.vmem [shape: bf16[128,128], index: 1, kind: input, shape index: {}]
  %s2 = inlined_call_operand.vmem [shape: f32[1,128], index: 2, kind: input, shape index: {}]
  %s3 = inlined_call_operand.vmem [shape: f32[16,128], index: 3, kind: output, shape index: {}]
  %s4 = sld [smem:[#allocation0]]
  $region22: #{harm_attn_forward.6} parent=0
    _
  %s6 = ssub.s32 1, %s4
  %s7 = scalar_select 0, %s6, %s4
  // Predicated region
  $region2: #{harm_attn_forward.6} parent=0 // pred_check
    _
  $region3: #{harm_attn_forward.6} parent=0 // pred_check_branch
    %9 = sbr.rel (0) target = $region5
  $region4: #{harm_attn_forward.6} parent=0 // pred_region
    _
  $region5: #{harm_attn_forward.6} parent=0 // pred_fallthru
    _
  // Predicated region
  $region6: #{harm_attn_forward.6} parent=0 // pred_check
    _
  $region7: #{harm_attn_forward.6} parent=0 // pred_check_branch
    %11 = sbr.rel (0) target = $region9
  $region8: #{harm_attn_forward.6} parent=0 // pred_region
    _
  $region9: #{harm_attn_forward.6} parent=0 // pred_fallthru
    _
  // Predicated region
  $region10: #{harm_attn_forward.6} parent=0 // pred_check
    _
  $region11: #{harm_attn_forward.6} parent=0 // pred_check_branch
    %13 = sbr.rel (0) target = $region13
  $region12: #{harm_attn_forward.6} parent=0 // pred_region
    _
  $region13: #{harm_attn_forward.6} parent=0 // pred_fallthru
    _
  %v15 = vld [vmem:[%s0] sm:$0xf]
  %v16 = vld [vmem:[%s0 + $0x4] sm:$0xf]
  %v17 = vld [vmem:[%s1] sm:$0xf]
  %v18 = vld [vmem:[%s1 + $0x4] sm:$0xf]
  %v19 = vld [vmem:[%s1 + $0x8] sm:$0xf]
  %v20 = vld [vmem:[%s1 + $0xc] sm:$0xf]
  %v21 = vld [vmem:[%s1 + $0x10] sm:$0xf]
  %v22 = vld [vmem:[%s1 + $0x14] sm:$0xf]
  %v23 = vld [vmem:[%s1 + $0x18] sm:$0xf]
  %v24 = vld [vmem:[%s1 + $0x1c] sm:$0xf]
  %v25 = vld [vmem:[%s1 + $0x20] sm:$0xf]
  %v26 = vld [vmem:[%s1 + $0x24] sm:$0xf]
  %v27 = vld [vmem:[%s1 + $0x28] sm:$0xf]
  %v28 = vld [vmem:[%s1 + $0x2c] sm:$0xf]
  %v29 = vld [vmem:[%s1 + $0x30] sm:$0xf]
  %v30 = vld [vmem:[%s1 + $0x34] sm:$0xf]
  %v31 = vld [vmem:[%s1 + $0x38] sm:$0xf]
  %v32 = vld [vmem:[%s1 + $0x3c] sm:$0xf]
  %v33 = vld [vmem:[%s2] sm:$0x1]
  %v35 = vlaneseq
  %v36 = vshrl.u32 %v35, 7
  %v37 = vsub.s32 0, %v36
  %v38 = vrot.slane %v33, %v37
  %v42 = vunpack.c.l.b16 %v15
  %v43 = vunpack.c.l.b16 %v16
  %v44 = vpack.c.b16 %v43, %v42
  %v62 = vunpack.c.l.b16 %v17
  %v63 = vunpack.c.l.b16 %v18
  %v64 = vunpack.c.l.b16 %v19
  %v65 = vunpack.c.l.b16 %v20
  %v66 = vunpack.c.l.b16 %v21
  %v67 = vunpack.c.l.b16 %v22
  %v68 = vunpack.c.l.b16 %v23
  %v69 = vunpack.c.l.b16 %v24
  %v70 = vunpack.c.l.b16 %v25
  %v71 = vunpack.c.l.b16 %v26
  %v72 = vunpack.c.l.b16 %v27
  %v73 = vunpack.c.l.b16 %v28
  %v74 = vunpack.c.l.b16 %v29
  %v75 = vunpack.c.l.b16 %v30
  %v76 = vunpack.c.l.b16 %v31
  %v77 = vunpack.c.l.b16 %v32
  %v78 = vpack.c.b16 %v63, %v62
  %v79 = vpack.c.b16 %v65, %v64
  %v80 = vpack.c.b16 %v67, %v66
  %v81 = vpack.c.b16 %v69, %v68
  %v82 = vpack.c.b16 %v71, %v70
  %v83 = vpack.c.b16 %v73, %v72
  %v84 = vpack.c.b16 %v75, %v74
  %v85 = vpack.c.b16 %v77, %v76
  %94 = vmatprep.subr.bf16.mxu0 0
  %95 = vmatpush1.bf16.msra.mxu0 %v78
  %96 = vmatprep.subr.bf16.mxu0 0
  %97 = vmatpush1.bf16.msra.mxu0 %v79
  %98 = vmatprep.subr.bf16.mxu0 0
  %99 = vmatpush1.bf16.msra.mxu0 %v80
  %100 = vmatprep.subr.bf16.mxu0 0
  %101 = vmatpush1.bf16.msra.mxu0 %v81
  %102 = vmatprep.subr.bf16.mxu0 0
  %103 = vmatpush1.bf16.msra.mxu0 %v82
  %104 = vmatprep.subr.bf16.mxu0 0
  %105 = vmatpush1.bf16.msra.mxu0 %v83
  %106 = vmatprep.subr.bf16.mxu0 0
  %107 = vmatpush1.bf16.msra.mxu0 %v84
  %108 = vmatprep.subr.bf16.mxu0 0
  %109 = vmatpush1.bf16.msra.mxu0 %v85
  %110 = vmatprep.subr.bf16.mxu0 0
  %111 = vmatpush1.bf16.msra.mxu0 0
  %112 = vmatprep.subr.bf16.mxu0 0
  %113 = vmatpush1.bf16.msra.mxu0 0
  %114 = vmatprep.subr.bf16.mxu0 0
  %115 = vmatpush1.bf16.msra.mxu0 0
  %116 = vmatprep.subr.bf16.mxu0 0
  %117 = vmatpush1.bf16.msra.mxu0 0
  %118 = vmatprep.subr.bf16.mxu0 0
  %119 = vmatpush1.bf16.msra.mxu0 0
  %120 = vmatprep.subr.bf16.mxu0 0
  %121 = vmatpush1.bf16.msra.mxu0 0
  %122 = vmatprep.subr.bf16.mxu0 0
  %123 = vmatpush1.bf16.msra.mxu0 0
  %124 = vmatprep.subr.bf16.mxu0 0
  %125 = vmatpush1.bf16.msra.mxu0 0
  %126 = vmatprep.mubr.bf16.mxu0 0
  %127 = vmatmul.mubr.bf16.gmra.mrb[0].mxu0 %v44
  %v128 = vpop.f32.mrb[0].mxu0
  %v129 = vadd.f32 %v38, %v128
  %v130 = vpop.f32.mrb[0].mxu0
  %v131 = vpop.f32.mrb[0].mxu0
  %v132 = vadd.f32 %v38, %v131
  %v133 = vpop.f32.mrb[0].mxu0
  %134 = vdwg.mxu0
  %v135 = vtanh.pop %v129
  %v136 = vtanh.pop %v132
  %137 = vst [vmem:[%s3] sm:$0xff] %v135
  %138 = vst [vmem:[%s3 + $0x8] sm:$0xff] %v136
  // Predicated region
  $region14: #{harm_attn_forward.6} parent=0 // pred_check
    _
  $region15: #{harm_attn_forward.6} parent=0 // pred_check_branch
    %140 = sbr.rel (0) target = $region17
  $region16: #{harm_attn_forward.6} parent=0 // pred_region
    _
  $region17: #{harm_attn_forward.6} parent=0 // pred_fallthru
    _
  // Predicated region
  $region18: #{harm_attn_forward.6} parent=0 // pred_check
    _
  $region19: #{harm_attn_forward.6} parent=0 // pred_check_branch
    %142 = sbr.rel (0) target = $region21
  $region20: #{harm_attn_forward.6} parent=0 // pred_region
    _
  $region21: #{harm_attn_forward.6} parent=0 // pred_fallthru
    _

// kernel: harm_attn_forward.8
$region0: #{harm_attn_forward.8}
  #allocation0 [shape = 'u32[]', space=smem, size = 0x4, offset = 0x4, fixed_abs, tag = 'smem constant byte address 0x4 - core index']
  #allocation1 [shape = 'u32[144,128]{1,0:T(1,128)}', space=vmem, size = 0x12000, scoped, tag = 'internal scratch']
  %s0 = inlined_call_operand.vmem [shape: bf16[512,128], index: 0, kind: input, shape index: {}]
  %s1 = inlined_call_operand.vmem [shape: bf16[128,128], index: 1, kind: input, shape index: {}]
  %s2 = inlined_call_operand.vmem [shape: f32[1,128], index: 2, kind: input, shape index: {}]
  %s3 = inlined_call_operand.vmem [shape: f32[512,128], index: 3, kind: output, shape index: {}]
  %s4 = sld [smem:[#allocation0]]
  $region45: #{harm_attn_forward.8} parent=0
    _
  %s6 = ssub.s32 1, %s4
  %s7 = scalar_select 0, %s6, %s4
  loop: start=0, step=1, limit=4
  $region2: #{harm_attn_forward.8} parent=0 // loop_pre_header
    _
  $region3: #{harm_attn_forward.8} parent=0 // loop_header
    %s9 = sphi 0, %s13
    %p10 = scmp.ge.s32.totalorder %s9, 4
    %s19 = sphi 0, %s21
    %s22 = sphi 0, %s19
    %s23 = sphi 0, %s22
    %s39 = sphi 0, %s23
    %s43 = sphi 0, %s43
    %s45 = sphi 0, %s43
    %s46 = sphi 0, %s45
    %s60 = sphi 0, %s46
    %s64 = sphi 0, %s64
    %s66 = sphi 0, %s64
    %s67 = sphi 0, %s66
    %s81 = sphi 0, %s67
    %s87 = sphi 0, %s89
    %s90 = sphi 0, %s87
    %s91 = sphi 0, %s90
    %s107 = sphi 0, %s91
  $region4: #{harm_attn_forward.8} parent=0 // loop_header_branch
    %12 = sbr.rel (%p10) target = $region8
  $region5: #{harm_attn_forward.8} parent=0 // loop_body
    %s14 = ssub.s32 %s9, 1
    %s15 = ssub.s32 %s9, 2
    %s16 = sadd.s32 %s9, 1
    %s17 = ssub.s32 %s9, %s16
    %p18 = scmp.eq.s32.totalorder %s17, 0
    %s20 = sadd.s32 %s19, 1
    %s21 = scalar_select %p18, %s19, %s20
    %p24 = pneg %p18
    %p25 = scmp.eq.s32.totalorder %s9, 1
    %p26 = por %p24, %p25
    %p27 = scmp.ne.s32.totalorder %s19, %s22
    %p28 = scmp.eq.s32.totalorder %s9, 0
    %p29 = por %p27, %p28
    %p30 = scmp.ne.s32.totalorder %s19, %s22
    %p31 = scmp.eq.s32.totalorder %s14, 1
    %p32 = por %p30, %p31
    %p33 = scmp.ne.s32.totalorder %s22, %s23
    %p34 = scmp.eq.s32.totalorder %s14, 0
    %p35 = por %p33, %p34
    %p36 = scmp.ne.s32.totalorder %s22, %s23
    %p37 = scmp.eq.s32.totalorder %s15, 1
    %p38 = por %p36, %p37
    %p40 = scmp.ne.s32.totalorder %s23, %s39
    %p41 = scmp.eq.s32.totalorder %s15, 0
    %p42 = por %p40, %p41
    %s44 = sadd.s32 %s43, 1
    %p47 = scmp.eq.s32.totalorder %s9, 1
    %p48 = scmp.ne.s32.totalorder %s43, %s45
    %p49 = scmp.eq.s32.totalorder %s9, 0
    %p50 = por %p48, %p49
    %p51 = scmp.ne.s32.totalorder %s43, %s45
    %p52 = scmp.eq.s32.totalorder %s14, 1
    %p53 = por %p51, %p52
    %p54 = scmp.ne.s32.totalorder %s45, %s46
    %p55 = scmp.eq.s32.totalorder %s14, 0
    %p56 = por %p54, %p55
    %p57 = scmp.ne.s32.totalorder %s45, %s46
    %p58 = scmp.eq.s32.totalorder %s15, 1
    %p59 = por %p57, %p58
    %p61 = scmp.ne.s32.totalorder %s46, %s60
    %p62 = scmp.eq.s32.totalorder %s15, 0
    %p63 = por %p61, %p62
    %s65 = sadd.s32 %s64, 1
    %p68 = scmp.eq.s32.totalorder %s9, 1
    %p69 = scmp.ne.s32.totalorder %s64, %s66
    %p70 = scmp.eq.s32.totalorder %s9, 0
    %p71 = por %p69, %p70
    %p72 = scmp.ne.s32.totalorder %s64, %s66
    %p73 = scmp.eq.s32.totalorder %s14, 1
    %p74 = por %p72, %p73
    %p75 = scmp.ne.s32.totalorder %s66, %s67
    %p76 = scmp.eq.s32.totalorder %s14, 0
    %p77 = por %p75, %p76
    %p78 = scmp.ne.s32.totalorder %s66, %s67
    %p79 = scmp.eq.s32.totalorder %s15, 1
    %p80 = por %p78, %p79
    %p82 = scmp.ne.s32.totalorder %s67, %s81
    %p83 = scmp.eq.s32.totalorder %s15, 0
    %p84 = por %p82, %p83
    %s85 = ssub.s32 %s9, %s16
    %p86 = scmp.eq.s32.totalorder %s85, 0
    %s88 = sadd.s32 %s87, 1
    %s89 = scalar_select %p86, %s87, %s88
    %p92 = pneg %p86
    %p93 = scmp.eq.s32.totalorder %s9, 1
    %p94 = por %p92, %p93
    %p95 = scmp.ne.s32.totalorder %s87, %s90
    %p96 = scmp.eq.s32.totalorder %s9, 0
    %p97 = por %p95, %p96
    %p98 = scmp.ne.s32.totalorder %s87, %s90
    %p99 = scmp.eq.s32.totalorder %s14, 1
    %p100 = por %p98, %p99
    %p101 = scmp.ne.s32.totalorder %s90, %s91
    %p102 = scmp.eq.s32.totalorder %s14, 0
    %p103 = por %p101, %p102
    %p104 = scmp.ne.s32.totalorder %s90, %s91
    %p105 = scmp.eq.s32.totalorder %s15, 1
    %p106 = por %p104, %p105
    %p108 = scmp.ne.s32.totalorder %s91, %s107
    %p109 = scmp.eq.s32.totalorder %s15, 0
    %p110 = por %p108, %p109
    %p111 = scmp.le.s32.totalorder 1, %s9
    %p112 = scmp.lt.s32.totalorder %s9, 3
    %p113 = pnand %p111, %p112
    %p114 = pneg %p113
    // Predicated region
    $region9: #{harm_attn_forward.8} parent=5 // pred_check
      _
    $region10: #{harm_attn_forward.8} parent=5 // pred_check_branch
      %116 = sbr.rel (%p113) target = $region12
    $region11: #{harm_attn_forward.8} parent=5 // pred_region
      %s117 = ssub.s32 %s9, 1
      // Predicated region
      $region13: #{harm_attn_forward.8} parent=11 // pred_check
        %p118 = pneg %p56
      $region14: #{harm_attn_forward.8} parent=11 // pred_check_branch
        %120 = sbr.rel (%p118) target = $region16
      $region15: #{harm_attn_forward.8} parent=11 // pred_region
        _
      $region16: #{harm_attn_forward.8} parent=11 // pred_fallthru
        _
      // Predicated region
      $region17: #{harm_attn_forward.8} parent=11 // pred_check
        %p121 = pneg %p77
      $region18: #{harm_attn_forward.8} parent=11 // pred_check_branch
        %123 = sbr.rel (%p121) target = $region20
      $region19: #{harm_attn_forward.8} parent=11 // pred_region
        _
      $region20: #{harm_attn_forward.8} parent=11 // pred_fallthru
        _
    $region12: #{harm_attn_forward.8} parent=5 // pred_fallthru
      _
    %p124 = scmp.lt.s32.totalorder %s9, 2
    // Predicated region
    $region21: #{harm_attn_forward.8} parent=5 // pred_check
      %p125 = pneg %p124
    $region22: #{harm_attn_forward.8} parent=5 // pred_check_branch
      %127 = sbr.rel (%p125) target = $region24
    $region23: #{harm_attn_forward.8} parent=5 // pred_region
      // Predicated region
      $region25: #{harm_attn_forward.8} parent=23 // pred_check
        %p128 = pneg %p29
      $region26: #{harm_attn_forward.8} parent=23 // pred_check_branch
        %130 = sbr.rel (%p128) target = $region28
      $region27: #{harm_attn_forward.8} parent=23 // pred_region
        %s131 = smul.u32 32, %s9
        %p132 = scmp.lt.s32.totalorder %s131, 63
        %s133 = scalar_select %p132, %s131, 63
        %s134 = smul.addr %s133, 4
        %s135 = scalar_lea.vmem %s0, %s134
        %s136 = smul.u32 32, %s9
      $region28: #{harm_attn_forward.8} parent=23 // pred_fallthru
        _
    $region24: #{harm_attn_forward.8} parent=5 // pred_fallthru
      _
    %p137 = scmp.le.s32.totalorder 1, %s9
    %p138 = scmp.lt.s32.totalorder %s9, 3
    %p139 = pnand %p137, %p138
    %p140 = pneg %p139
    // Predicated region
    $region29: #{harm_attn_forward.8} parent=5 // pred_check
      _
    $region30: #{harm_attn_forward.8} parent=5 // pred_check_branch
      %142 = sbr.rel (%p139) target = $region32
    $region31: #{harm_attn_forward.8} parent=5 // pred_region
      %s143 = ssub.s32 %s9, 1
      %s144 = smul.u32 32, %s14
      %p145 = scmp.lt.s32.totalorder %s144, 63
      %s146 = scalar_select %p145, %s144, 63
      %s147 = smul.addr %s146, 4
      %s148 = scalar_lea.vmem %s0, %s147
      %p149 = pneg %p35
      %p150 = pneg %p32
      %p151 = pneg %p56
      %p152 = pneg %p53
      %p153 = pneg %p77
      %p154 = pneg %p74
      %p155 = pneg %p103
      %p156 = pneg %p100
      %s157 = smul.u32 32, %s14
      %p158 = scmp.lt.s32.totalorder %s157, 63
      %s159 = scalar_select %p158, %s157, 63
      %s160 = smul.addr %s159, 8
      %s161 = scalar_lea.vmem %s3, %s160
      %s162 = smul.u32 32, %s14
      %p163 = scmp.lt.s32.totalorder %s162, 63
      %s164 = scalar_select %p163, %s162, 63
      %s165 = smul.addr %s164, 4
      %s166 = scalar_lea.vmem %s0, %s165
      %s167 = smul.u32 32, %s14
      %s168 = smul.u32 32, %s14
      %p169 = scmp.lt.s32.totalorder %s168, 63
      %s170 = scalar_select %p169, %s168, 63
      %s171 = smul.addr %s170, 8
      %s172 = scalar_lea.vmem %s3, %s171
      %s173 = smul.u32 32, %s14
      %v175 = vld [vmem:[%s166] sm:$0xf]
      %v176 = vld [vmem:[%s166 + $0x4] sm:$0xf]
      %v177 = vld [vmem:[%s166 + $0x8] sm:$0xf]
      %v178 = vld [vmem:[%s166 + $0xc] sm:$0xf]
      %v179 = vld [vmem:[%s166 + $0x10] sm:$0xf]
      %v180 = vld [vmem:[%s166 + $0x14] sm:$0xf]
      %v181 = vld [vmem:[%s166 + $0x18] sm:$0xf]
      %v182 = vld [vmem:[%s166 + $0x1c] sm:$0xf]
      %v183 = vld [vmem:[%s166 + $0x20] sm:$0xf]
      %v184 = vld [vmem:[%s166 + $0x24] sm:$0xf]
      %v185 = vld [vmem:[%s166 + $0x28] sm:$0xf]
      %v186 = vld [vmem:[%s166 + $0x2c] sm:$0xf]
      %v187 = vld [vmem:[%s166 + $0x30] sm:$0xf]
      %v188 = vld [vmem:[%s166 + $0x34] sm:$0xf]
      %v189 = vld [vmem:[%s166 + $0x38] sm:$0xf]
      %v190 = vld [vmem:[%s166 + $0x3c] sm:$0xf]
      %v191 = vld [vmem:[%s166 + $0x40] sm:$0xf]
      %v192 = vld [vmem:[%s166 + $0x44] sm:$0xf]
      %v193 = vld [vmem:[%s166 + $0x48] sm:$0xf]
      %v194 = vld [vmem:[%s166 + $0x4c] sm:$0xf]
      %v195 = vld [vmem:[%s166 + $0x50] sm:$0xf]
      %v196 = vld [vmem:[%s166 + $0x54] sm:$0xf]
      %v197 = vld [vmem:[%s166 + $0x58] sm:$0xf]
      %v198 = vld [vmem:[%s166 + $0x5c] sm:$0xf]
      %v199 = vld [vmem:[%s166 + $0x60] sm:$0xf]
      %v200 = vld [vmem:[%s166 + $0x64] sm:$0xf]
      %v201 = vld [vmem:[%s166 + $0x68] sm:$0xf]
      %v202 = vld [vmem:[%s166 + $0x6c] sm:$0xf]
      %v203 = vld [vmem:[%s166 + $0x70] sm:$0xf]
      %v204 = vld [vmem:[%s166 + $0x74] sm:$0xf]
      %v205 = vld [vmem:[%s166 + $0x78] sm:$0xf]
      %v206 = vld [vmem:[%s166 + $0x7c] sm:$0xf]
      %v207 = vld [vmem:[%s1] sm:$0xf]
      %v208 = vld [vmem:[%s1 + $0x4] sm:$0xf]
      %v209 = vld [vmem:[%s1 + $0x8] sm:$0xf]
      %v210 = vld [vmem:[%s1 + $0xc] sm:$0xf]
      %v211 = vld [vmem:[%s1 + $0x10] sm:$0xf]
      %v212 = vld [vmem:[%s1 + $0x14] sm:$0xf]
      %v213 = vld [vmem:[%s1 + $0x18] sm:$0xf]
      %v214 = vld [vmem:[%s1 + $0x1c] sm:$0xf]
      %v215 = vld [vmem:[%s1 + $0x20] sm:$0xf]
      %v216 = vld [vmem:[%s1 + $0x24] sm:$0xf]
      %v217 = vld [vmem:[%s1 + $0x28] sm:$0xf]
      %v218 = vld [vmem:[%s1 + $0x2c] sm:$0xf]
      %v219 = vld [vmem:[%s1 + $0x30] sm:$0xf]
      %v220 = vld [vmem:[%s1 + $0x34] sm:$0xf]
      %v221 = vld [vmem:[%s1 + $0x38] sm:$0xf]
      %v222 = vld [vmem:[%s1 + $0x3c] sm:$0xf]
      %v223 = vld [vmem:[%s2] sm:$0x1]
      %v225 = vlaneseq
      %v226 = vshrl.u32 %v225, 7
      %v227 = vsub.s32 0, %v226
      %v228 = vrot.slane %v223, %v227
      %v262 = vunpack.c.l.b16 %v175
      %v263 = vunpack.c.l.b16 %v176
      %v264 = vunpack.c.l.b16 %v177
      %v265 = vunpack.c.l.b16 %v178
      %v266 = vunpack.c.l.b16 %v179
      %v267 = vunpack.c.l.b16 %v180
      %v268 = vunpack.c.l.b16 %v181
      %v269 = vunpack.c.l.b16 %v182
      %v270 = vunpack.c.l.b16 %v183
      %v271 = vunpack.c.l.b16 %v184
      %v272 = vunpack.c.l.b16 %v185
      %v273 = vunpack.c.l.b16 %v186
      %v274 = vunpack.c.l.b16 %v187
      %v275 = vunpack.c.l.b16 %v188
      %v276 = vunpack.c.l.b16 %v189
      %v277 = vunpack.c.l.b16 %v190
      %v278 = vunpack.c.l.b16 %v191
      %v279 = vunpack.c.l.b16 %v192
      %v280 = vunpack.c.l.b16 %v193
      %v281 = vunpack.c.l.b16 %v194
      %v282 = vunpack.c.l.b16 %v195
      %v283 = vunpack.c.l.b16 %v196
      %v284 = vunpack.c.l.b16 %v197
      %v285 = vunpack.c.l.b16 %v198
      %v286 = vunpack.c.l.b16 %v199
      %v287 = vunpack.c.l.b16 %v200
      %v288 = vunpack.c.l.b16 %v201
      %v289 = vunpack.c.l.b16 %v202
      %v290 = vunpack.c.l.b16 %v203
      %v291 = vunpack.c.l.b16 %v204
      %v292 = vunpack.c.l.b16 %v205
      %v293 = vunpack.c.l.b16 %v206
      %v294 = vpack.c.b16 %v263, %v262
      %v295 = vpack.c.b16 %v265, %v264
      %v296 = vpack.c.b16 %v267, %v266
      %v297 = vpack.c.b16 %v269, %v268
      %v298 = vpack.c.b16 %v271, %v270
      %v299 = vpack.c.b16 %v273, %v272
      %v300 = vpack.c.b16 %v275, %v274
      %v301 = vpack.c.b16 %v277, %v276
      %v302 = vpack.c.b16 %v279, %v278
      %v303 = vpack.c.b16 %v281, %v280
      %v304 = vpack.c.b16 %v283, %v282
      %v305 = vpack.c.b16 %v285, %v284
      %v306 = vpack.c.b16 %v287, %v286
      %v307 = vpack.c.b16 %v289, %v288
      %v308 = vpack.c.b16 %v291, %v290
      %v309 = vpack.c.b16 %v293, %v292
      %v342 = vunpack.c.l.b16 %v207
      %v343 = vunpack.c.l.b16 %v208
      %v344 = vunpack.c.l.b16 %v209
      %v345 = vunpack.c.l.b16 %v210
      %v346 = vunpack.c.l.b16 %v211
      %v347 = vunpack.c.l.b16 %v212
      %v348 = vunpack.c.l.b16 %v213
      %v349 = vunpack.c.l.b16 %v214
      %v350 = vunpack.c.l.b16 %v215
      %v351 = vunpack.c.l.b16 %v216
      %v352 = vunpack.c.l.b16 %v217
      %v353 = vunpack.c.l.b16 %v218
      %v354 = vunpack.c.l.b16 %v219
      %v355 = vunpack.c.l.b16 %v220
      %v356 = vunpack.c.l.b16 %v221
      %v357 = vunpack.c.l.b16 %v222
      %v358 = vpack.c.b16 %v343, %v342
      %v359 = vpack.c.b16 %v345, %v344
      %v360 = vpack.c.b16 %v347, %v346
      %v361 = vpack.c.b16 %v349, %v348
      %v362 = vpack.c.b16 %v351, %v350
      %v363 = vpack.c.b16 %v353, %v352
      %v364 = vpack.c.b16 %v355, %v354
      %v365 = vpack.c.b16 %v357, %v356
      %374 = vmatprep.subr.bf16.mxu0 0
      %375 = vmatpush1.bf16.msra.mxu0 %v358
      %376 = vmatprep.subr.bf16.mxu0 0
      %377 = vmatpush1.bf16.msra.mxu0 %v359
      %378 = vmatprep.subr.bf16.mxu0 0
      %379 = vmatpush1.bf16.msra.mxu0 %v360
      %380 = vmatprep.subr.bf16.mxu0 0
      %381 = vmatpush1.bf16.msra.mxu0 %v361
      %382 = vmatprep.subr.bf16.mxu0 0
      %383 = vmatpush1.bf16.msra.mxu0 %v362
      %384 = vmatprep.subr.bf16.mxu0 0
      %385 = vmatpush1.bf16.msra.mxu0 %v363
      %386 = vmatprep.subr.bf16.mxu0 0
      %387 = vmatpush1.bf16.msra.mxu0 %v364
      %388 = vmatprep.subr.bf16.mxu0 0
      %389 = vmatpush1.bf16.msra.mxu0 %v365
      %390 = vmatprep.subr.bf16.mxu0 0
      %391 = vmatpush1.bf16.msra.mxu0 0
      %392 = vmatprep.subr.bf16.mxu0 0
      %393 = vmatpush1.bf16.msra.mxu0 0
      %394 = vmatprep.subr.bf16.mxu0 0
      %395 = vmatpush1.bf16.msra.mxu0 0
      %396 = vmatprep.subr.bf16.mxu0 0
      %397 = vmatpush1.bf16.msra.mxu0 0
      %398 = vmatprep.subr.bf16.mxu0 0
      %399 = vmatpush1.bf16.msra.mxu0 0
      %400 = vmatprep.subr.bf16.mxu0 0
      %401 = vmatpush1.bf16.msra.mxu0 0
      %402 = vmatprep.subr.bf16.mxu0 0
      %403 = vmatpush1.bf16.msra.mxu0 0
      %404 = vmatprep.subr.bf16.mxu0 0
      %405 = vmatpush1.bf16.msra.mxu0 0
      %406 = vmatprep.mubr.bf16.mxu0 0
      %407 = vmatmul.mubr.bf16.gmra.mrb[0].mxu0 %v294
      %v408 = vpop.f32.mrb[0].mxu0
      %v409 = vadd.f32 %v228, %v408
      %v410 = vpop.f32.mrb[0].mxu0
      %v411 = vpop.f32.mrb[0].mxu0
      %v412 = vadd.f32 %v228, %v411
      %v413 = vpop.f32.mrb[0].mxu0
      %414 = vmatprep.mubr.bf16.mxu0 0
      %415 = vmatmul.mubr.bf16.gmra.mrb[0].mxu0 %v295
      %v416 = vpop.f32.mrb[0].mxu0
      %v417 = vadd.f32 %v228, %v416
      %v418 = vpop.f32.mrb[0].mxu0
      %v419 = vpop.f32.mrb[0].mxu0
      %v420 = vadd.f32 %v228, %v419
      %v421 = vpop.f32.mrb[0].mxu0
      %422 = vmatprep.mubr.bf16.mxu0 0
      %423 = vmatmul.mubr.bf16.gmra.mrb[0].mxu0 %v296
      %v424 = vpop.f32.mrb[0].mxu0
      %v425 = vadd.f32 %v228, %v424
      %v426 = vpop.f32.mrb[0].mxu0
      %v427 = vpop.f32.mrb[0].mxu0
      %v428 = vadd.f32 %v228, %v427
      %v429 = vpop.f32.mrb[0].mxu0
      %430 = vmatprep.mubr.bf16.mxu0 0
      %431 = vmatmul.mubr.bf16.gmra.mrb[0].mxu0 %v297
      %v432 = vpop.f32.mrb[0].mxu0
      %v433 = vadd.f32 %v228, %v432
      %v434 = vpop.f32.mrb[0].mxu0
      %v435 = vpop.f32.mrb[0].mxu0
      %v436 = vadd.f32 %v228, %v435
      %v437 = vpop.f32.mrb[0].mxu0
      %438 = vmatprep.mubr.bf16.mxu0 0
      %439 = vmatmul.mubr.bf16.gmra.mrb[0].mxu0 %v298
      %v440 = vpop.f32.mrb[0].mxu0
      %v441 = vadd.f32 %v228, %v440
      %v442 = vpop.f32.mrb[0].mxu0
      %v443 = vpop.f32.mrb[0].mxu0
      %v444 = vadd.f32 %v228, %v443
      %v445 = vpop.f32.mrb[0].mxu0
      %446 = vmatprep.mubr.bf16.mxu0 0
      %447 = vmatmul.mubr.bf16.gmra.mrb[0].mxu0 %v299
      %v448 = vpop.f32.mrb[0].mxu0
      %v449 = vadd.f32 %v228, %v448
      %v450 = vpop.f32.mrb[0].mxu0
      %v451 = vpop.f32.mrb[0].mxu0
      %v452 = vadd.f32 %v228, %v451
      %v453 = vpop.f32.mrb[0].mxu0
      %454 = vmatprep.mubr.bf16.mxu0 0
      %455 = vmatmul.mubr.bf16.gmra.mrb[0].mxu0 %v300
      %v456 = vpop.f32.mrb[0].mxu0
      %v457 = vadd.f32 %v228, %v456
      %v458 = vpop.f32.mrb[0].mxu0
      %v459 = vpop.f32.mrb[0].mxu0
      %v460 = vadd.f32 %v228, %v459
      %v461 = vpop.f32.mrb[0].mxu0
      %462 = vmatprep.mubr.bf16.mxu0 0
      %463 = vmatmul.mubr.bf16.gmra.mrb[0].mxu0 %v301
      %v464 = vpop.f32.mrb[0].mxu0
      %v465 = vadd.f32 %v228, %v464
      %v466 = vpop.f32.mrb[0].mxu0
      %v467 = vpop.f32.mrb[0].mxu0
      %v468 = vadd.f32 %v228, %v467
      %v469 = vpop.f32.mrb[0].mxu0
      %470 = vmatprep.mubr.bf16.mxu0 0
      %471 = vmatmul.mubr.bf16.gmra.mrb[0].mxu0 %v302
      %v472 = vpop.f32.mrb[0].mxu0
      %v473 = vadd.f32 %v228, %v472
      %v474 = vpop.f32.mrb[0].mxu0
      %v475 = vpop.f32.mrb[0].mxu0
      %v476 = vadd.f32 %v228, %v475
      %v477 = vpop.f32.mrb[0].mxu0
      %478 = vmatprep.mubr.bf16.mxu0 0
      %479 = vmatmul.mubr.bf16.gmra.mrb[0].mxu0 %v303
      %v480 = vpop.f32.mrb[0].mxu0
      %v481 = vadd.f32 %v228, %v480
      %v482 = vpop.f32.mrb[0].mxu0
      %v483 = vpop.f32.mrb[0].mxu0
      %v484 = vadd.f32 %v228, %v483
      %v485 = vpop.f32.mrb[0].mxu0
      %486 = vmatprep.mubr.bf16.mxu0 0
      %487 = vmatmul.mubr.bf16.gmra.mrb[0].mxu0 %v304
      %v488 = vpop.f32.mrb[0].mxu0
      %v489 = vadd.f32 %v228, %v488
      %v490 = vpop.f32.mrb[0].mxu0
      %v491 = vpop.f32.mrb[0].mxu0
      %v492 = vadd.f32 %v228, %v491
      %v493 = vpop.f32.mrb[0].mxu0
      %494 = vmatprep.mubr.bf16.mxu0 0
      %495 = vmatmul.mubr.bf16.gmra.mrb[0].mxu0 %v305
      %v496 = vpop.f32.mrb[0].mxu0
      %v497 = vadd.f32 %v228, %v496
      %v498 = vpop.f32.mrb[0].mxu0
      %v499 = vpop.f32.mrb[0].mxu0
      %v500 = vadd.f32 %v228, %v499
      %v501 = vpop.f32.mrb[0].mxu0
      %502 = vmatprep.mubr.bf16.mxu0 0
      %503 = vmatmul.mubr.bf16.gmra.mrb[0].mxu0 %v306
      %v504 = vpop.f32.mrb[0].mxu0
      %v505 = vadd.f32 %v228, %v504
      %v506 = vpop.f32.mrb[0].mxu0
      %v507 = vpop.f32.mrb[0].mxu0
      %v508 = vadd.f32 %v228, %v507
      %v509 = vpop.f32.mrb[0].mxu0
      %510 = vmatprep.mubr.bf16.mxu0 0
      %511 = vmatmul.mubr.bf16.gmra.mrb[0].mxu0 %v307
      %v512 = vpop.f32.mrb[0].mxu0
      %v513 = vadd.f32 %v228, %v512
      %v514 = vpop.f32.mrb[0].mxu0
      %v515 = vpop.f32.mrb[0].mxu0
      %v516 = vadd.f32 %v228, %v515
      %v517 = vpop.f32.mrb[0].mxu0
      %518 = vmatprep.mubr.bf16.mxu0 0
      %519 = vmatmul.mubr.bf16.gmra.mrb[0].mxu0 %v308
      %v520 = vpop.f32.mrb[0].mxu0
      %v521 = vadd.f32 %v228, %v520
      %v522 = vpop.f32.mrb[0].mxu0
      %v523 = vpop.f32.mrb[0].mxu0
      %v524 = vadd.f32 %v228, %v523
      %v525 = vpop.f32.mrb[0].mxu0
      %526 = vmatprep.mubr.bf16.mxu0 0
      %527 = vmatmul.mubr.bf16.gmra.mrb[0].mxu0 %v309
      %v528 = vpop.f32.mrb[0].mxu0
      %v529 = vadd.f32 %v228, %v528
      %v530 = vpop.f32.mrb[0].mxu0
      %v531 = vpop.f32.mrb[0].mxu0
      %v532 = vadd.f32 %v228, %v531
      %v533 = vpop.f32.mrb[0].mxu0
      %534 = vdwg.mxu0
      %v535 = vmax.f32 %v409, 0.0
      %v536 = vmax.f32 %v412, 0.0
      %v537 = vmax.f32 %v417, 0.0
      %v538 = vmax.f32 %v420, 0.0
      %v539 = vmax.f32 %v425, 0.0
      %v540 = vmax.f32 %v428, 0.0
      %v541 = vmax.f32 %v433, 0.0
      %v542 = vmax.f32 %v436, 0.0
      %v543 = vmax.f32 %v441, 0.0
      %v544 = vmax.f32 %v444, 0.0
      %v545 = vmax.f32 %v449, 0.0
      %v546 = vmax.f32 %v452, 0.0
      %v547 = vmax.f32 %v457, 0.0
      %v548 = vmax.f32 %v460, 0.0
      %v549 = vmax.f32 %v465, 0.0
      %v550 = vmax.f32 %v468, 0.0
      %v551 = vmax.f32 %v473, 0.0
      %v552 = vmax.f32 %v476, 0.0
      %v553 = vmax.f32 %v481, 0.0
      %v554 = vmax.f32 %v484, 0.0
      %v555 = vmax.f32 %v489, 0.0
      %v556 = vmax.f32 %v492, 0.0
      %v557 = vmax.f32 %v497, 0.0
      %v558 = vmax.f32 %v500, 0.0
      %v559 = vmax.f32 %v505, 0.0
      %v560 = vmax.f32 %v508, 0.0
      %v561 = vmax.f32 %v513, 0.0
      %v562 = vmax.f32 %v516, 0.0
      %v563 = vmax.f32 %v521, 0.0
      %v564 = vmax.f32 %v524, 0.0
      %v565 = vmax.f32 %v529, 0.0
      %v566 = vmax.f32 %v532, 0.0
      %v567 = vmin.f32 %v535, 6.0
      %v568 = vmin.f32 %v536, 6.0
      %v569 = vmin.f32 %v537, 6.0
      %v570 = vmin.f32 %v538, 6.0
      %v571 = vmin.f32 %v539, 6.0
      %v572 = vmin.f32 %v540, 6.0
      %v573 = vmin.f32 %v541, 6.0
      %v574 = vmin.f32 %v542, 6.0
      %v575 = vmin.f32 %v543, 6.0
      %v576 = vmin.f32 %v544, 6.0
      %v577 = vmin.f32 %v545, 6.0
      %v578 = vmin.f32 %v546, 6.0
      %v579 = vmin.f32 %v547, 6.0
      %v580 = vmin.f32 %v548, 6.0
      %v581 = vmin.f32 %v549, 6.0
      %v582 = vmin.f32 %v550, 6.0
      %v583 = vmin.f32 %v551, 6.0
      %v584 = vmin.f32 %v552, 6.0
      %v585 = vmin.f32 %v553, 6.0
      %v586 = vmin.f32 %v554, 6.0
      %v587 = vmin.f32 %v555, 6.0
      %v588 = vmin.f32 %v556, 6.0
      %v589 = vmin.f32 %v557, 6.0
      %v590 = vmin.f32 %v558, 6.0
      %v591 = vmin.f32 %v559, 6.0
      %v592 = vmin.f32 %v560, 6.0
      %v593 = vmin.f32 %v561, 6.0
      %v594 = vmin.f32 %v562, 6.0
      %v595 = vmin.f32 %v563, 6.0
      %v596 = vmin.f32 %v564, 6.0
      %v597 = vmin.f32 %v565, 6.0
      %v598 = vmin.f32 %v566, 6.0
      %599 = vst [vmem:[%s172] sm:$0xff] %v567
      %600 = vst [vmem:[%s172 + $0x8] sm:$0xff] %v568
      %601 = vst [vmem:[%s172 + $0x10] sm:$0xff] %v569
      %602 = vst [vmem:[%s172 + $0x18] sm:$0xff] %v570
      %603 = vst [vmem:[%s172 + $0x20] sm:$0xff] %v571
      %604 = vst [vmem:[%s172 + $0x28] sm:$0xff] %v572
      %605 = vst [vmem:[%s172 + $0x30] sm:$0xff] %v573
      %606 = vst [vmem:[%s172 + $0x38] sm:$0xff] %v574
      %607 = vst [vmem:[%s172 + $0x40] sm:$0xff] %v575
      %608 = vst [vmem:[%s172 + $0x48] sm:$0xff] %v576
      %609 = vst [vmem:[%s172 + $0x50] sm:$0xff] %v577
      %610 = vst [vmem:[%s172 + $0x58] sm:$0xff] %v578
      %611 = vst [vmem:[%s172 + $0x60] sm:$0xff] %v579
      %612 = vst [vmem:[%s172 + $0x68] sm:$0xff] %v580
      %613 = vst [vmem:[%s172 + $0x70] sm:$0xff] %v581
      %614 = vst [vmem:[%s172 + $0x78] sm:$0xff] %v582
      %615 = vst [vmem:[%s172 + $0x80] sm:$0xff] %v583
      %616 = vst [vmem:[%s172 + $0x88] sm:$0xff] %v584
      %617 = vst [vmem:[%s172 + $0x90] sm:$0xff] %v585
      %618 = vst [vmem:[%s172 + $0x98] sm:$0xff] %v586
      %619 = vst [vmem:[%s172 + $0xa0] sm:$0xff] %v587
      %620 = vst [vmem:[%s172 + $0xa8] sm:$0xff] %v588
      %621 = vst [vmem:[%s172 + $0xb0] sm:$0xff] %v589
      %622 = vst [vmem:[%s172 + $0xb8] sm:$0xff] %v590
      %623 = vst [vmem:[%s172 + $0xc0] sm:$0xff] %v591
      %624 = vst [vmem:[%s172 + $0xc8] sm:$0xff] %v592
      %625 = vst [vmem:[%s172 + $0xd0] sm:$0xff] %v593
      %626 = vst [vmem:[%s172 + $0xd8] sm:$0xff] %v594
      %627 = vst [vmem:[%s172 + $0xe0] sm:$0xff] %v595
      %628 = vst [vmem:[%s172 + $0xe8] sm:$0xff] %v596
      %629 = vst [vmem:[%s172 + $0xf0] sm:$0xff] %v597
      %630 = vst [vmem:[%s172 + $0xf8] sm:$0xff] %v598
      %s631 = smul.u32 32, %s14
      %p632 = scmp.lt.s32.totalorder %s631, 63
      %s633 = scalar_select %p632, %s631, 63
      %s634 = smul.addr %s633, 8
      %s635 = scalar_lea.vmem %s3, %s634
      // Predicated region
      $region33: #{harm_attn_forward.8} parent=31 // pred_check
        %p636 = pneg %p100
      $region34: #{harm_attn_forward.8} parent=31 // pred_check_branch
        %638 = sbr.rel (%p636) target = $region36
      $region35: #{harm_attn_forward.8} parent=31 // pred_region
        %s639 = smul.u32 32, %s14
      $region36: #{harm_attn_forward.8} parent=31 // pred_fallthru
        _
    $region32: #{harm_attn_forward.8} parent=5 // pred_fallthru
      _
    %p640 = scmp.le.s32.totalorder 2, %s9
    // Predicated region
    $region37: #{harm_attn_forward.8} parent=5 // pred_check
      %p641 = pneg %p640
    $region38: #{harm_attn_forward.8} parent=5 // pred_check_branch
      %643 = sbr.rel (%p641) target = $region40
    $region39: #{harm_attn_forward.8} parent=5 // pred_region
      %s644 = ssub.s32 %s9, 2
      // Predicated region
      $region41: #{harm_attn_forward.8} parent=39 // pred_check
        %p645 = pneg %p106
      $region42: #{harm_attn_forward.8} parent=39 // pred_check_branch
        %647 = sbr.rel (%p645) target = $region44
      $region43: #{harm_attn_forward.8} parent=39 // pred_region
        %s648 = smul.u32 32, %s15
        %p649 = scmp.lt.s32.totalorder %s648, 63
        %s650 = scalar_select %p649, %s648, 63
        %s651 = smul.addr %s650, 8
        %s652 = scalar_lea.vmem %s3, %s651
      $region44: #{harm_attn_forward.8} parent=39 // pred_fallthru
        _
    $region40: #{harm_attn_forward.8} parent=5 // pred_fallthru
      _
  $region6: #{harm_attn_forward.8} parent=0 // loop_footer
    %s13 = sadd.s32 1, %s9
  $region7: #{harm_attn_forward.8} parent=0 // loop_footer_branch
    %8 = sbr.rel target = $region3
  $region8: #{harm_attn_forward.8} parent=0 // loop_exit
    _

// kernel: harm_attn_forward.11
$region0: #{harm_attn_forward.11}
  #allocation0 [shape = 'u32[]', space=smem, size = 0x4, offset = 0x4, fixed_abs, tag = 'smem constant byte address 0x4 - core index']
  #allocation1 [shape = 'u32[144,128]{1,0:T(1,128)}', space=vmem, size = 0x12000, scoped, tag = 'internal scratch']
  %s0 = inlined_call_operand.vmem [shape: bf16[512,128], index: 0, kind: input, shape index: {}]
  %s1 = inlined_call_operand.vmem [shape: bf16[128,128], index: 1, kind: input, shape index: {}]
  %s2 = inlined_call_operand.vmem [shape: f32[1,128], index: 2, kind: input, shape index: {}]
  %s3 = inlined_call_operand.vmem [shape: f32[512,128], index: 3, kind: output, shape index: {}]
  %s4 = sld [smem:[#allocation0]]
  $region45: #{harm_attn_forward.11} parent=0
    _
  %s6 = ssub.s32 1, %s4
  %s7 = scalar_select 0, %s6, %s4
  loop: start=0, step=1, limit=4
  $region2: #{harm_attn_forward.11} parent=0 // loop_pre_header
    _
  $region3: #{harm_attn_forward.11} parent=0 // loop_header
    %s9 = sphi 0, %s13
    %p10 = scmp.ge.s32.totalorder %s9, 4
    %s19 = sphi 0, %s21
    %s22 = sphi 0, %s19
    %s23 = sphi 0, %s22
    %s39 = sphi 0, %s23
    %s43 = sphi 0, %s43
    %s45 = sphi 0, %s43
    %s46 = sphi 0, %s45
    %s60 = sphi 0, %s46
    %s64 = sphi 0, %s64
    %s66 = sphi 0, %s64
    %s67 = sphi 0, %s66
    %s81 = sphi 0, %s67
    %s87 = sphi 0, %s89
    %s90 = sphi 0, %s87
    %s91 = sphi 0, %s90
    %s107 = sphi 0, %s91
  $region4: #{harm_attn_forward.11} parent=0 // loop_header_branch
    %12 = sbr.rel (%p10) target = $region8
  $region5: #{harm_attn_forward.11} parent=0 // loop_body
    %s14 = ssub.s32 %s9, 1
    %s15 = ssub.s32 %s9, 2
    %s16 = sadd.s32 %s9, 1
    %s17 = ssub.s32 %s9, %s16
    %p18 = scmp.eq.s32.totalorder %s17, 0
    %s20 = sadd.s32 %s19, 1
    %s21 = scalar_select %p18, %s19, %s20
    %p24 = pneg %p18
    %p25 = scmp.eq.s32.totalorder %s9, 1
    %p26 = por %p24, %p25
    %p27 = scmp.ne.s32.totalorder %s19, %s22
    %p28 = scmp.eq.s32.totalorder %s9, 0
    %p29 = por %p27, %p28
    %p30 = scmp.ne.s32.totalorder %s19, %s22
    %p31 = scmp.eq.s32.totalorder %s14, 1
    %p32 = por %p30, %p31
    %p33 = scmp.ne.s32.totalorder %s22, %s23
    %p34 = scmp.eq.s32.totalorder %s14, 0
    %p35 = por %p33, %p34
    %p36 = scmp.ne.s32.totalorder %s22, %s23
    %p37 = scmp.eq.s32.totalorder %s15, 1
    %p38 = por %p36, %p37
    %p40 = scmp.ne.s32.totalorder %s23, %s39
    %p41 = scmp.eq.s32.totalorder %s15, 0
    %p42 = por %p40, %p41
    %s44 = sadd.s32 %s43, 1
    %p47 = scmp.eq.s32.totalorder %s9, 1
    %p48 = scmp.ne.s32.totalorder %s43, %s45
    %p49 = scmp.eq.s32.totalorder %s9, 0
    %p50 = por %p48, %p49
    %p51 = scmp.ne.s32.totalorder %s43, %s45
    %p52 = scmp.eq.s32.totalorder %s14, 1
    %p53 = por %p51, %p52
    %p54 = scmp.ne.s32.totalorder %s45, %s46
    %p55 = scmp.eq.s32.totalorder %s14, 0
    %p56 = por %p54, %p55
    %p57 = scmp.ne.s32.totalorder %s45, %s46
    %p58 = scmp.eq.s32.totalorder %s15, 1
    %p59 = por %p57, %p58
    %p61 = scmp.ne.s32.totalorder %s46, %s60
    %p62 = scmp.eq.s32.totalorder %s15, 0
    %p63 = por %p61, %p62
    %s65 = sadd.s32 %s64, 1
    %p68 = scmp.eq.s32.totalorder %s9, 1
    %p69 = scmp.ne.s32.totalorder %s64, %s66
    %p70 = scmp.eq.s32.totalorder %s9, 0
    %p71 = por %p69, %p70
    %p72 = scmp.ne.s32.totalorder %s64, %s66
    %p73 = scmp.eq.s32.totalorder %s14, 1
    %p74 = por %p72, %p73
    %p75 = scmp.ne.s32.totalorder %s66, %s67
    %p76 = scmp.eq.s32.totalorder %s14, 0
    %p77 = por %p75, %p76
    %p78 = scmp.ne.s32.totalorder %s66, %s67
    %p79 = scmp.eq.s32.totalorder %s15, 1
    %p80 = por %p78, %p79
    %p82 = scmp.ne.s32.totalorder %s67, %s81
    %p83 = scmp.eq.s32.totalorder %s15, 0
    %p84 = por %p82, %p83
    %s85 = ssub.s32 %s9, %s16
    %p86 = scmp.eq.s32.totalorder %s85, 0
    %s88 = sadd.s32 %s87, 1
    %s89 = scalar_select %p86, %s87, %s88
    %p92 = pneg %p86
    %p93 = scmp.eq.s32.totalorder %s9, 1
    %p94 = por %p92, %p93
    %p95 = scmp.ne.s32.totalorder %s87, %s90
    %p96 = scmp.eq.s32.totalorder %s9, 0
    %p97 = por %p95, %p96
    %p98 = scmp.ne.s32.totalorder %s87, %s90
    %p99 = scmp.eq.s32.totalorder %s14, 1
    %p100 = por %p98, %p99
    %p101 = scmp.ne.s32.totalorder %s90, %s91
    %p102 = scmp.eq.s32.totalorder %s14, 0
    %p103 = por %p101, %p102
    %p104 = scmp.ne.s32.totalorder %s90, %s91
    %p105 = scmp.eq.s32.totalorder %s15, 1
    %p106 = por %p104, %p105
    %p108 = scmp.ne.s32.totalorder %s91, %s107
    %p109 = scmp.eq.s32.totalorder %s15, 0
    %p110 = por %p108, %p109
    %p111 = scmp.le.s32.totalorder 1, %s9
    %p112 = scmp.lt.s32.totalorder %s9, 3
    %p113 = pnand %p111, %p112
    %p114 = pneg %p113
    // Predicated region
    $region9: #{harm_attn_forward.11} parent=5 // pred_check
      _
    $region10: #{harm_attn_forward.11} parent=5 // pred_check_branch
      %116 = sbr.rel (%p113) target = $region12
    $region11: #{harm_attn_forward.11} parent=5 // pred_region
      %s117 = ssub.s32 %s9, 1
      // Predicated region
      $region13: #{harm_attn_forward.11} parent=11 // pred_check
        %p118 = pneg %p56
      $region14: #{harm_attn_forward.11} parent=11 // pred_check_branch
        %120 = sbr.rel (%p118) target = $region16
      $region15: #{harm_attn_forward.11} parent=11 // pred_region
        _
      $region16: #{harm_attn_forward.11} parent=11 // pred_fallthru
        _
      // Predicated region
      $region17: #{harm_attn_forward.11} parent=11 // pred_check
        %p121 = pneg %p77
      $region18: #{harm_attn_forward.11} parent=11 // pred_check_branch
        %123 = sbr.rel (%p121) target = $region20
      $region19: #{harm_attn_forward.11} parent=11 // pred_region
        _
      $region20: #{harm_attn_forward.11} parent=11 // pred_fallthru
        _
    $region12: #{harm_attn_forward.11} parent=5 // pred_fallthru
      _
    %p124 = scmp.lt.s32.totalorder %s9, 2
    // Predicated region
    $region21: #{harm_attn_forward.11} parent=5 // pred_check
      %p125 = pneg %p124
    $region22: #{harm_attn_forward.11} parent=5 // pred_check_branch
      %127 = sbr.rel (%p125) target = $region24
    $region23: #{harm_attn_forward.11} parent=5 // pred_region
      // Predicated region
      $region25: #{harm_attn_forward.11} parent=23 // pred_check
        %p128 = pneg %p29
      $region26: #{harm_attn_forward.11} parent=23 // pred_check_branch
        %130 = sbr.rel (%p128) target = $region28
      $region27: #{harm_attn_forward.11} parent=23 // pred_region
        %s131 = smul.u32 32, %s9
        %p132 = scmp.lt.s32.totalorder %s131, 63
        %s133 = scalar_select %p132, %s131, 63
        %s134 = smul.addr %s133, 4
        %s135 = scalar_lea.vmem %s0, %s134
        %s136 = smul.u32 32, %s9
      $region28: #{harm_attn_forward.11} parent=23 // pred_fallthru
        _
    $region24: #{harm_attn_forward.11} parent=5 // pred_fallthru
      _
    %p137 = scmp.le.s32.totalorder 1, %s9
    %p138 = scmp.lt.s32.totalorder %s9, 3
    %p139 = pnand %p137, %p138
    %p140 = pneg %p139
    // Predicated region
    $region29: #{harm_attn_forward.11} parent=5 // pred_check
      _
    $region30: #{harm_attn_forward.11} parent=5 // pred_check_branch
      %142 = sbr.rel (%p139) target = $region32
    $region31: #{harm_attn_forward.11} parent=5 // pred_region
      %s143 = ssub.s32 %s9, 1
      %s144 = smul.u32 32, %s14
      %p145 = scmp.lt.s32.totalorder %s144, 63
      %s146 = scalar_select %p145, %s144, 63
      %s147 = smul.addr %s146, 4
      %s148 = scalar_lea.vmem %s0, %s147
      %p149 = pneg %p35
      %p150 = pneg %p32
      %p151 = pneg %p56
      %p152 = pneg %p53
      %p153 = pneg %p77
      %p154 = pneg %p74
      %p155 = pneg %p103
      %p156 = pneg %p100
      %s157 = smul.u32 32, %s14
      %p158 = scmp.lt.s32.totalorder %s157, 63
      %s159 = scalar_select %p158, %s157, 63
      %s160 = smul.addr %s159, 8
      %s161 = scalar_lea.vmem %s3, %s160
      %s162 = smul.u32 32, %s14
      %p163 = scmp.lt.s32.totalorder %s162, 63
      %s164 = scalar_select %p163, %s162, 63
      %s165 = smul.addr %s164, 4
      %s166 = scalar_lea.vmem %s0, %s165
      %s167 = smul.u32 32, %s14
      %s168 = smul.u32 32, %s14
      %p169 = scmp.lt.s32.totalorder %s168, 63
      %s170 = scalar_select %p169, %s168, 63
      %s171 = smul.addr %s170, 8
      %s172 = scalar_lea.vmem %s3, %s171
      %s173 = smul.u32 32, %s14
      %v175 = vld [vmem:[%s166] sm:$0xf]
      %v176 = vld [vmem:[%s166 + $0x4] sm:$0xf]
      %v177 = vld [vmem:[%s166 + $0x8] sm:$0xf]
      %v178 = vld [vmem:[%s166 + $0xc] sm:$0xf]
      %v179 = vld [vmem:[%s166 + $0x10] sm:$0xf]
      %v180 = vld [vmem:[%s166 + $0x14] sm:$0xf]
      %v181 = vld [vmem:[%s166 + $0x18] sm:$0xf]
      %v182 = vld [vmem:[%s166 + $0x1c] sm:$0xf]
      %v183 = vld [vmem:[%s166 + $0x20] sm:$0xf]
      %v184 = vld [vmem:[%s166 + $0x24] sm:$0xf]
      %v185 = vld [vmem:[%s166 + $0x28] sm:$0xf]
      %v186 = vld [vmem:[%s166 + $0x2c] sm:$0xf]
      %v187 = vld [vmem:[%s166 + $0x30] sm:$0xf]
      %v188 = vld [vmem:[%s166 + $0x34] sm:$0xf]
      %v189 = vld [vmem:[%s166 + $0x38] sm:$0xf]
      %v190 = vld [vmem:[%s166 + $0x3c] sm:$0xf]
      %v191 = vld [vmem:[%s166 + $0x40] sm:$0xf]
      %v192 = vld [vmem:[%s166 + $0x44] sm:$0xf]
      %v193 = vld [vmem:[%s166 + $0x48] sm:$0xf]
      %v194 = vld [vmem:[%s166 + $0x4c] sm:$0xf]
      %v195 = vld [vmem:[%s166 + $0x50] sm:$0xf]
      %v196 = vld [vmem:[%s166 + $0x54] sm:$0xf]
      %v197 = vld [vmem:[%s166 + $0x58] sm:$0xf]
      %v198 = vld [vmem:[%s166 + $0x5c] sm:$0xf]
      %v199 = vld [vmem:[%s166 + $0x60] sm:$0xf]
      %v200 = vld [vmem:[%s166 + $0x64] sm:$0xf]
      %v201 = vld [vmem:[%s166 + $0x68] sm:$0xf]
      %v202 = vld [vmem:[%s166 + $0x6c] sm:$0xf]
      %v203 = vld [vmem:[%s166 + $0x70] sm:$0xf]
      %v204 = vld [vmem:[%s166 + $0x74] sm:$0xf]
      %v205 = vld [vmem:[%s166 + $0x78] sm:$0xf]
      %v206 = vld [vmem:[%s166 + $0x7c] sm:$0xf]
      %v207 = vld [vmem:[%s1] sm:$0xf]
      %v208 = vld [vmem:[%s1 + $0x4] sm:$0xf]
      %v209 = vld [vmem:[%s1 + $0x8] sm:$0xf]
      %v210 = vld [vmem:[%s1 + $0xc] sm:$0xf]
      %v211 = vld [vmem:[%s1 + $0x10] sm:$0xf]
      %v212 = vld [vmem:[%s1 + $0x14] sm:$0xf]
      %v213 = vld [vmem:[%s1 + $0x18] sm:$0xf]
      %v214 = vld [vmem:[%s1 + $0x1c] sm:$0xf]
      %v215 = vld [vmem:[%s1 + $0x20] sm:$0xf]
      %v216 = vld [vmem:[%s1 + $0x24] sm:$0xf]
      %v217 = vld [vmem:[%s1 + $0x28] sm:$0xf]
      %v218 = vld [vmem:[%s1 + $0x2c] sm:$0xf]
      %v219 = vld [vmem:[%s1 + $0x30] sm:$0xf]
      %v220 = vld [vmem:[%s1 + $0x34] sm:$0xf]
      %v221 = vld [vmem:[%s1 + $0x38] sm:$0xf]
      %v222 = vld [vmem:[%s1 + $0x3c] sm:$0xf]
      %v223 = vld [vmem:[%s2] sm:$0x1]
      %v225 = vlaneseq
      %v226 = vshrl.u32 %v225, 7
      %v227 = vsub.s32 0, %v226
      %v228 = vrot.slane %v223, %v227
      %v262 = vunpack.c.l.b16 %v175
      %v263 = vunpack.c.l.b16 %v176
      %v264 = vunpack.c.l.b16 %v177
      %v265 = vunpack.c.l.b16 %v178
      %v266 = vunpack.c.l.b16 %v179
      %v267 = vunpack.c.l.b16 %v180
      %v268 = vunpack.c.l.b16 %v181
      %v269 = vunpack.c.l.b16 %v182
      %v270 = vunpack.c.l.b16 %v183
      %v271 = vunpack.c.l.b16 %v184
      %v272 = vunpack.c.l.b16 %v185
      %v273 = vunpack.c.l.b16 %v186
      %v274 = vunpack.c.l.b16 %v187
      %v275 = vunpack.c.l.b16 %v188
      %v276 = vunpack.c.l.b16 %v189
      %v277 = vunpack.c.l.b16 %v190
      %v278 = vunpack.c.l.b16 %v191
      %v279 = vunpack.c.l.b16 %v192
      %v280 = vunpack.c.l.b16 %v193
      %v281 = vunpack.c.l.b16 %v194
      %v282 = vunpack.c.l.b16 %v195
      %v283 = vunpack.c.l.b16 %v196
      %v284 = vunpack.c.l.b16 %v197
      %v285 = vunpack.c.l.b16 %v198
      %v286 = vunpack.c.l.b16 %v199
      %v287 = vunpack.c.l.b16 %v200
      %v288 = vunpack.c.l.b16 %v201
      %v289 = vunpack.c.l.b16 %v202
      %v290 = vunpack.c.l.b16 %v203
      %v291 = vunpack.c.l.b16 %v204
      %v292 = vunpack.c.l.b16 %v205
      %v293 = vunpack.c.l.b16 %v206
      %v294 = vpack.c.b16 %v263, %v262
      %v295 = vpack.c.b16 %v265, %v264
      %v296 = vpack.c.b16 %v267, %v266
      %v297 = vpack.c.b16 %v269, %v268
      %v298 = vpack.c.b16 %v271, %v270
      %v299 = vpack.c.b16 %v273, %v272
      %v300 = vpack.c.b16 %v275, %v274
      %v301 = vpack.c.b16 %v277, %v276
      %v302 = vpack.c.b16 %v279, %v278
      %v303 = vpack.c.b16 %v281, %v280
      %v304 = vpack.c.b16 %v283, %v282
      %v305 = vpack.c.b16 %v285, %v284
      %v306 = vpack.c.b16 %v287, %v286
      %v307 = vpack.c.b16 %v289, %v288
      %v308 = vpack.c.b16 %v291, %v290
      %v309 = vpack.c.b16 %v293, %v292
      %v342 = vunpack.c.l.b16 %v207
      %v343 = vunpack.c.l.b16 %v208
      %v344 = vunpack.c.l.b16 %v209
      %v345 = vunpack.c.l.b16 %v210
      %v346 = vunpack.c.l.b16 %v211
      %v347 = vunpack.c.l.b16 %v212
      %v348 = vunpack.c.l.b16 %v213
      %v349 = vunpack.c.l.b16 %v214
      %v350 = vunpack.c.l.b16 %v215
      %v351 = vunpack.c.l.b16 %v216
      %v352 = vunpack.c.l.b16 %v217
      %v353 = vunpack.c.l.b16 %v218
      %v354 = vunpack.c.l.b16 %v219
      %v355 = vunpack.c.l.b16 %v220
      %v356 = vunpack.c.l.b16 %v221
      %v357 = vunpack.c.l.b16 %v222
      %v358 = vpack.c.b16 %v343, %v342
      %v359 = vpack.c.b16 %v345, %v344
      %v360 = vpack.c.b16 %v347, %v346
      %v361 = vpack.c.b16 %v349, %v348
      %v362 = vpack.c.b16 %v351, %v350
      %v363 = vpack.c.b16 %v353, %v352
      %v364 = vpack.c.b16 %v355, %v354
      %v365 = vpack.c.b16 %v357, %v356
      %374 = vmatprep.subr.bf16.mxu0 0
      %375 = vmatpush1.bf16.msra.mxu0 %v358
      %376 = vmatprep.subr.bf16.mxu0 0
      %377 = vmatpush1.bf16.msra.mxu0 %v359
      %378 = vmatprep.subr.bf16.mxu0 0
      %379 = vmatpush1.bf16.msra.mxu0 %v360
      %380 = vmatprep.subr.bf16.mxu0 0
      %381 = vmatpush1.bf16.msra.mxu0 %v361
      %382 = vmatprep.subr.bf16.mxu0 0
      %383 = vmatpush1.bf16.msra.mxu0 %v362
      %384 = vmatprep.subr.bf16.mxu0 0
      %385 = vmatpush1.bf16.msra.mxu0 %v363
      %386 = vmatprep.subr.bf16.mxu0 0
      %387 = vmatpush1.bf16.msra.mxu0 %v364
      %388 = vmatprep.subr.bf16.mxu0 0
      %389 = vmatpush1.bf16.msra.mxu0 %v365
      %390 = vmatprep.subr.bf16.mxu0 0
      %391 = vmatpush1.bf16.msra.mxu0 0
      %392 = vmatprep.subr.bf16.mxu0 0
      %393 = vmatpush1.bf16.msra.mxu0 0
      %394 = vmatprep.subr.bf16.mxu0 0
      %395 = vmatpush1.bf16.msra.mxu0 0
      %396 = vmatprep.subr.bf16.mxu0 0
      %397 = vmatpush1.bf16.msra.mxu0 0
      %398 = vmatprep.subr.bf16.mxu0 0
      %399 = vmatpush1.bf16.msra.mxu0 0
      %400 = vmatprep.subr.bf16.mxu0 0
      %401 = vmatpush1.bf16.msra.mxu0 0
      %402 = vmatprep.subr.bf16.mxu0 0
      %403 = vmatpush1.bf16.msra.mxu0 0
      %404 = vmatprep.subr.bf16.mxu0 0
      %405 = vmatpush1.bf16.msra.mxu0 0
      %406 = vmatprep.mubr.bf16.mxu0 0
      %407 = vmatmul.mubr.bf16.gmra.mrb[0].mxu0 %v294
      %v408 = vpop.f32.mrb[0].mxu0
      %v409 = vadd.f32 %v228, %v408
      %v410 = vpop.f32.mrb[0].mxu0
      %v411 = vpop.f32.mrb[0].mxu0
      %v412 = vadd.f32 %v228, %v411
      %v413 = vpop.f32.mrb[0].mxu0
      %414 = vmatprep.mubr.bf16.mxu0 0
      %415 = vmatmul.mubr.bf16.gmra.mrb[0].mxu0 %v295
      %v416 = vpop.f32.mrb[0].mxu0
      %v417 = vadd.f32 %v228, %v416
      %v418 = vpop.f32.mrb[0].mxu0
      %v419 = vpop.f32.mrb[0].mxu0
      %v420 = vadd.f32 %v228, %v419
      %v421 = vpop.f32.mrb[0].mxu0
      %422 = vmatprep.mubr.bf16.mxu0 0
      %423 = vmatmul.mubr.bf16.gmra.mrb[0].mxu0 %v296
      %v424 = vpop.f32.mrb[0].mxu0
      %v425 = vadd.f32 %v228, %v424
      %v426 = vpop.f32.mrb[0].mxu0
      %v427 = vpop.f32.mrb[0].mxu0
      %v428 = vadd.f32 %v228, %v427
      %v429 = vpop.f32.mrb[0].mxu0
      %430 = vmatprep.mubr.bf16.mxu0 0
      %431 = vmatmul.mubr.bf16.gmra.mrb[0].mxu0 %v297
      %v432 = vpop.f32.mrb[0].mxu0
      %v433 = vadd.f32 %v228, %v432
      %v434 = vpop.f32.mrb[0].mxu0
      %v435 = vpop.f32.mrb[0].mxu0
      %v436 = vadd.f32 %v228, %v435
      %v437 = vpop.f32.mrb[0].mxu0
      %438 = vmatprep.mubr.bf16.mxu0 0
      %439 = vmatmul.mubr.bf16.gmra.mrb[0].mxu0 %v298
      %v440 = vpop.f32.mrb[0].mxu0
      %v441 = vadd.f32 %v228, %v440
      %v442 = vpop.f32.mrb[0].mxu0
      %v443 = vpop.f32.mrb[0].mxu0
      %v444 = vadd.f32 %v228, %v443
      %v445 = vpop.f32.mrb[0].mxu0
      %446 = vmatprep.mubr.bf16.mxu0 0
      %447 = vmatmul.mubr.bf16.gmra.mrb[0].mxu0 %v299
      %v448 = vpop.f32.mrb[0].mxu0
      %v449 = vadd.f32 %v228, %v448
      %v450 = vpop.f32.mrb[0].mxu0
      %v451 = vpop.f32.mrb[0].mxu0
      %v452 = vadd.f32 %v228, %v451
      %v453 = vpop.f32.mrb[0].mxu0
      %454 = vmatprep.mubr.bf16.mxu0 0
      %455 = vmatmul.mubr.bf16.gmra.mrb[0].mxu0 %v300
      %v456 = vpop.f32.mrb[0].mxu0
      %v457 = vadd.f32 %v228, %v456
      %v458 = vpop.f32.mrb[0].mxu0
      %v459 = vpop.f32.mrb[0].mxu0
      %v460 = vadd.f32 %v228, %v459
      %v461 = vpop.f32.mrb[0].mxu0
      %462 = vmatprep.mubr.bf16.mxu0 0
      %463 = vmatmul.mubr.bf16.gmra.mrb[0].mxu0 %v301
      %v464 = vpop.f32.mrb[0].mxu0
      %v465 = vadd.f32 %v228, %v464
      %v466 = vpop.f32.mrb[0].mxu0
      %v467 = vpop.f32.mrb[0].mxu0
      %v468 = vadd.f32 %v228, %v467
      %v469 = vpop.f32.mrb[0].mxu0
      %470 = vmatprep.mubr.bf16.mxu0 0
      %471 = vmatmul.mubr.bf16.gmra.mrb[0].mxu0 %v302
      %v472 = vpop.f32.mrb[0].mxu0
      %v473 = vadd.f32 %v228, %v472
      %v474 = vpop.f32.mrb[0].mxu0
      %v475 = vpop.f32.mrb[0].mxu0
      %v476 = vadd.f32 %v228, %v475
      %v477 = vpop.f32.mrb[0].mxu0
      %478 = vmatprep.mubr.bf16.mxu0 0
      %479 = vmatmul.mubr.bf16.gmra.mrb[0].mxu0 %v303
      %v480 = vpop.f32.mrb[0].mxu0
      %v481 = vadd.f32 %v228, %v480
      %v482 = vpop.f32.mrb[0].mxu0
      %v483 = vpop.f32.mrb[0].mxu0
      %v484 = vadd.f32 %v228, %v483
      %v485 = vpop.f32.mrb[0].mxu0
      %486 = vmatprep.mubr.bf16.mxu0 0
      %487 = vmatmul.mubr.bf16.gmra.mrb[0].mxu0 %v304
      %v488 = vpop.f32.mrb[0].mxu0
      %v489 = vadd.f32 %v228, %v488
      %v490 = vpop.f32.mrb[0].mxu0
      %v491 = vpop.f32.mrb[0].mxu0
      %v492 = vadd.f32 %v228, %v491
      %v493 = vpop.f32.mrb[0].mxu0
      %494 = vmatprep.mubr.bf16.mxu0 0
      %495 = vmatmul.mubr.bf16.gmra.mrb[0].mxu0 %v305
      %v496 = vpop.f32.mrb[0].mxu0
      %v497 = vadd.f32 %v228, %v496
      %v498 = vpop.f32.mrb[0].mxu0
      %v499 = vpop.f32.mrb[0].mxu0
      %v500 = vadd.f32 %v228, %v499
      %v501 = vpop.f32.mrb[0].mxu0
      %502 = vmatprep.mubr.bf16.mxu0 0
      %503 = vmatmul.mubr.bf16.gmra.mrb[0].mxu0 %v306
      %v504 = vpop.f32.mrb[0].mxu0
      %v505 = vadd.f32 %v228, %v504
      %v506 = vpop.f32.mrb[0].mxu0
      %v507 = vpop.f32.mrb[0].mxu0
      %v508 = vadd.f32 %v228, %v507
      %v509 = vpop.f32.mrb[0].mxu0
      %510 = vmatprep.mubr.bf16.mxu0 0
      %511 = vmatmul.mubr.bf16.gmra.mrb[0].mxu0 %v307
      %v512 = vpop.f32.mrb[0].mxu0
      %v513 = vadd.f32 %v228, %v512
      %v514 = vpop.f32.mrb[0].mxu0
      %v515 = vpop.f32.mrb[0].mxu0
      %v516 = vadd.f32 %v228, %v515
      %v517 = vpop.f32.mrb[0].mxu0
      %518 = vmatprep.mubr.bf16.mxu0 0
      %519 = vmatmul.mubr.bf16.gmra.mrb[0].mxu0 %v308
      %v520 = vpop.f32.mrb[0].mxu0
      %v521 = vadd.f32 %v228, %v520
      %v522 = vpop.f32.mrb[0].mxu0
      %v523 = vpop.f32.mrb[0].mxu0
      %v524 = vadd.f32 %v228, %v523
      %v525 = vpop.f32.mrb[0].mxu0
      %526 = vmatprep.mubr.bf16.mxu0 0
      %527 = vmatmul.mubr.bf16.gmra.mrb[0].mxu0 %v309
      %v528 = vpop.f32.mrb[0].mxu0
      %v529 = vadd.f32 %v228, %v528
      %v530 = vpop.f32.mrb[0].mxu0
      %v531 = vpop.f32.mrb[0].mxu0
      %v532 = vadd.f32 %v228, %v531
      %v533 = vpop.f32.mrb[0].mxu0
      %534 = vdwg.mxu0
      %v535 = vmax.f32 %v409, 0.0
      %v536 = vmax.f32 %v412, 0.0
      %v537 = vmax.f32 %v417, 0.0
      %v538 = vmax.f32 %v420, 0.0
      %v539 = vmax.f32 %v425, 0.0
      %v540 = vmax.f32 %v428, 0.0
      %v541 = vmax.f32 %v433, 0.0
      %v542 = vmax.f32 %v436, 0.0
      %v543 = vmax.f32 %v441, 0.0
      %v544 = vmax.f32 %v444, 0.0
      %v545 = vmax.f32 %v449, 0.0
      %v546 = vmax.f32 %v452, 0.0
      %v547 = vmax.f32 %v457, 0.0
      %v548 = vmax.f32 %v460, 0.0
      %v549 = vmax.f32 %v465, 0.0
      %v550 = vmax.f32 %v468, 0.0
      %v551 = vmax.f32 %v473, 0.0
      %v552 = vmax.f32 %v476, 0.0
      %v553 = vmax.f32 %v481, 0.0
      %v554 = vmax.f32 %v484, 0.0
      %v555 = vmax.f32 %v489, 0.0
      %v556 = vmax.f32 %v492, 0.0
      %v557 = vmax.f32 %v497, 0.0
      %v558 = vmax.f32 %v500, 0.0
      %v559 = vmax.f32 %v505, 0.0
      %v560 = vmax.f32 %v508, 0.0
      %v561 = vmax.f32 %v513, 0.0
      %v562 = vmax.f32 %v516, 0.0
      %v563 = vmax.f32 %v521, 0.0
      %v564 = vmax.f32 %v524, 0.0
      %v565 = vmax.f32 %v529, 0.0
      %v566 = vmax.f32 %v532, 0.0
      %v567 = vmin.f32 %v535, 6.0
      %v568 = vmin.f32 %v536, 6.0
      %v569 = vmin.f32 %v537, 6.0
      %v570 = vmin.f32 %v538, 6.0
      %v571 = vmin.f32 %v539, 6.0
      %v572 = vmin.f32 %v540, 6.0
      %v573 = vmin.f32 %v541, 6.0
      %v574 = vmin.f32 %v542, 6.0
      %v575 = vmin.f32 %v543, 6.0
      %v576 = vmin.f32 %v544, 6.0
      %v577 = vmin.f32 %v545, 6.0
      %v578 = vmin.f32 %v546, 6.0
      %v579 = vmin.f32 %v547, 6.0
      %v580 = vmin.f32 %v548, 6.0
      %v581 = vmin.f32 %v549, 6.0
      %v582 = vmin.f32 %v550, 6.0
      %v583 = vmin.f32 %v551, 6.0
      %v584 = vmin.f32 %v552, 6.0
      %v585 = vmin.f32 %v553, 6.0
      %v586 = vmin.f32 %v554, 6.0
      %v587 = vmin.f32 %v555, 6.0
      %v588 = vmin.f32 %v556, 6.0
      %v589 = vmin.f32 %v557, 6.0
      %v590 = vmin.f32 %v558, 6.0
      %v591 = vmin.f32 %v559, 6.0
      %v592 = vmin.f32 %v560, 6.0
      %v593 = vmin.f32 %v561, 6.0
      %v594 = vmin.f32 %v562, 6.0
      %v595 = vmin.f32 %v563, 6.0
      %v596 = vmin.f32 %v564, 6.0
      %v597 = vmin.f32 %v565, 6.0
      %v598 = vmin.f32 %v566, 6.0
      %v599 = vxor.u32 %v567, 2147483648
      %v600 = vxor.u32 %v568, 2147483648
      %v601 = vxor.u32 %v569, 2147483648
      %v602 = vxor.u32 %v570, 2147483648
      %v603 = vxor.u32 %v571, 2147483648
      %v604 = vxor.u32 %v572, 2147483648
      %v605 = vxor.u32 %v573, 2147483648
      %v606 = vxor.u32 %v574, 2147483648
      %v607 = vxor.u32 %v575, 2147483648
      %v608 = vxor.u32 %v576, 2147483648
      %v609 = vxor.u32 %v577, 2147483648
      %v610 = vxor.u32 %v578, 2147483648
      %v611 = vxor.u32 %v579, 2147483648
      %v612 = vxor.u32 %v580, 2147483648
      %v613 = vxor.u32 %v581, 2147483648
      %v614 = vxor.u32 %v582, 2147483648
      %v615 = vxor.u32 %v583, 2147483648
      %v616 = vxor.u32 %v584, 2147483648
      %v617 = vxor.u32 %v585, 2147483648
      %v618 = vxor.u32 %v586, 2147483648
      %v619 = vxor.u32 %v587, 2147483648
      %v620 = vxor.u32 %v588, 2147483648
      %v621 = vxor.u32 %v589, 2147483648
      %v622 = vxor.u32 %v590, 2147483648
      %v623 = vxor.u32 %v591, 2147483648
      %v624 = vxor.u32 %v592, 2147483648
      %v625 = vxor.u32 %v593, 2147483648
      %v626 = vxor.u32 %v594, 2147483648
      %v627 = vxor.u32 %v595, 2147483648
      %v628 = vxor.u32 %v596, 2147483648
      %v629 = vxor.u32 %v597, 2147483648
      %v630 = vxor.u32 %v598, 2147483648
      %v631 = vmul.f32 %v599, 1.442695
      %v632 = vpow.pop %v631
      %v633 = vmul.f32 %v600, 1.442695
      %v634 = vpow.pop %v633
      %v635 = vmul.f32 %v601, 1.442695
      %v636 = vpow.pop %v635
      %v637 = vmul.f32 %v602, 1.442695
      %v638 = vpow.pop %v637
      %v639 = vmul.f32 %v603, 1.442695
      %v640 = vpow.pop %v639
      %v641 = vmul.f32 %v604, 1.442695
      %v642 = vpow.pop %v641
      %v643 = vmul.f32 %v605, 1.442695
      %v644 = vpow.pop %v643
      %v645 = vmul.f32 %v606, 1.442695
      %v646 = vpow.pop %v645
      %v647 = vmul.f32 %v607, 1.442695
      %v648 = vpow.pop %v647
      %v649 = vmul.f32 %v608, 1.442695
      %v650 = vpow.pop %v649
      %v651 = vmul.f32 %v609, 1.442695
      %v652 = vpow.pop %v651
      %v653 = vmul.f32 %v610, 1.442695
      %v654 = vpow.pop %v653
      %v655 = vmul.f32 %v611, 1.442695
      %v656 = vpow.pop %v655
      %v657 = vmul.f32 %v612, 1.442695
      %v658 = vpow.pop %v657
      %v659 = vmul.f32 %v613, 1.442695
      %v660 = vpow.pop %v659
      %v661 = vmul.f32 %v614, 1.442695
      %v662 = vpow.pop %v661
      %v663 = vmul.f32 %v615, 1.442695
      %v664 = vpow.pop %v663
      %v665 = vmul.f32 %v616, 1.442695
      %v666 = vpow.pop %v665
      %v667 = vmul.f32 %v617, 1.442695
      %v668 = vpow.pop %v667
      %v669 = vmul.f32 %v618, 1.442695
      %v670 = vpow.pop %v669
      %v671 = vmul.f32 %v619, 1.442695
      %v672 = vpow.pop %v671
      %v673 = vmul.f32 %v620, 1.442695
      %v674 = vpow.pop %v673
      %v675 = vmul.f32 %v621, 1.442695
      %v676 = vpow.pop %v675
      %v677 = vmul.f32 %v622, 1.442695
      %v678 = vpow.pop %v677
      %v679 = vmul.f32 %v623, 1.442695
      %v680 = vpow.pop %v679
      %v681 = vmul.f32 %v624, 1.442695
      %v682 = vpow.pop %v681
      %v683 = vmul.f32 %v625, 1.442695
      %v684 = vpow.pop %v683
      %v685 = vmul.f32 %v626, 1.442695
      %v686 = vpow.pop %v685
      %v687 = vmul.f32 %v627, 1.442695
      %v688 = vpow.pop %v687
      %v689 = vmul.f32 %v628, 1.442695
      %v690 = vpow.pop %v689
      %v691 = vmul.f32 %v629, 1.442695
      %v692 = vpow.pop %v691
      %v693 = vmul.f32 %v630, 1.442695
      %v694 = vpow.pop %v693
      %v695 = vadd.f32 %v632, 1.0
      %v696 = vadd.f32 %v634, 1.0
      %v697 = vadd.f32 %v636, 1.0
      %v698 = vadd.f32 %v638, 1.0
      %v699 = vadd.f32 %v640, 1.0
      %v700 = vadd.f32 %v642, 1.0
      %v701 = vadd.f32 %v644, 1.0
      %v702 = vadd.f32 %v646, 1.0
      %v703 = vadd.f32 %v648, 1.0
      %v704 = vadd.f32 %v650, 1.0
      %v705 = vadd.f32 %v652, 1.0
      %v706 = vadd.f32 %v654, 1.0
      %v707 = vadd.f32 %v656, 1.0
      %v708 = vadd.f32 %v658, 1.0
      %v709 = vadd.f32 %v660, 1.0
      %v710 = vadd.f32 %v662, 1.0
      %v711 = vadd.f32 %v664, 1.0
      %v712 = vadd.f32 %v666, 1.0
      %v713 = vadd.f32 %v668, 1.0
      %v714 = vadd.f32 %v670, 1.0
      %v715 = vadd.f32 %v672, 1.0
      %v716 = vadd.f32 %v674, 1.0
      %v717 = vadd.f32 %v676, 1.0
      %v718 = vadd.f32 %v678, 1.0
      %v719 = vadd.f32 %v680, 1.0
      %v720 = vadd.f32 %v682, 1.0
      %v721 = vadd.f32 %v684, 1.0
      %v722 = vadd.f32 %v686, 1.0
      %v723 = vadd.f32 %v688, 1.0
      %v724 = vadd.f32 %v690, 1.0
      %v725 = vadd.f32 %v692, 1.0
      %v726 = vadd.f32 %v694, 1.0
      %v727 = vrcp.pop %v695
      %v728 = vmul.f32 1.0, %v727
      %v729 = vrcp.pop %v696
      %v730 = vmul.f32 1.0, %v729
      %v731 = vrcp.pop %v697
      %v732 = vmul.f32 1.0, %v731
      %v733 = vrcp.pop %v698
      %v734 = vmul.f32 1.0, %v733
      %v735 = vrcp.pop %v699
      %v736 = vmul.f32 1.0, %v735
      %v737 = vrcp.pop %v700
      %v738 = vmul.f32 1.0, %v737
      %v739 = vrcp.pop %v701
      %v740 = vmul.f32 1.0, %v739
      %v741 = vrcp.pop %v702
      %v742 = vmul.f32 1.0, %v741
      %v743 = vrcp.pop %v703
      %v744 = vmul.f32 1.0, %v743
      %v745 = vrcp.pop %v704
      %v746 = vmul.f32 1.0, %v745
      %v747 = vrcp.pop %v705
      %v748 = vmul.f32 1.0, %v747
      %v749 = vrcp.pop %v706
      %v750 = vmul.f32 1.0, %v749
      %v751 = vrcp.pop %v707
      %v752 = vmul.f32 1.0, %v751
      %v753 = vrcp.pop %v708
      %v754 = vmul.f32 1.0, %v753
      %v755 = vrcp.pop %v709
      %v756 = vmul.f32 1.0, %v755
      %v757 = vrcp.pop %v710
      %v758 = vmul.f32 1.0, %v757
      %v759 = vrcp.pop %v711
      %v760 = vmul.f32 1.0, %v759
      %v761 = vrcp.pop %v712
      %v762 = vmul.f32 1.0, %v761
      %v763 = vrcp.pop %v713
      %v764 = vmul.f32 1.0, %v763
      %v765 = vrcp.pop %v714
      %v766 = vmul.f32 1.0, %v765
      %v767 = vrcp.pop %v715
      %v768 = vmul.f32 1.0, %v767
      %v769 = vrcp.pop %v716
      %v770 = vmul.f32 1.0, %v769
      %v771 = vrcp.pop %v717
      %v772 = vmul.f32 1.0, %v771
      %v773 = vrcp.pop %v718
      %v774 = vmul.f32 1.0, %v773
      %v775 = vrcp.pop %v719
      %v776 = vmul.f32 1.0, %v775
      %v777 = vrcp.pop %v720
      %v778 = vmul.f32 1.0, %v777
      %v779 = vrcp.pop %v721
      %v780 = vmul.f32 1.0, %v779
      %v781 = vrcp.pop %v722
      %v782 = vmul.f32 1.0, %v781
      %v783 = vrcp.pop %v723
      %v784 = vmul.f32 1.0, %v783
      %v785 = vrcp.pop %v724
      %v786 = vmul.f32 1.0, %v785
      %v787 = vrcp.pop %v725
      %v788 = vmul.f32 1.0, %v787
      %v789 = vrcp.pop %v726
      %v790 = vmul.f32 1.0, %v789
      %791 = vst [vmem:[%s172] sm:$0xff] %v728
      %792 = vst [vmem:[%s172 + $0x8] sm:$0xff] %v730
      %793 = vst [vmem:[%s172 + $0x10] sm:$0xff] %v732
      %794 = vst [vmem:[%s172 + $0x18] sm:$0xff] %v734
      %795 = vst [vmem:[%s172 + $0x20] sm:$0xff] %v736
      %796 = vst [vmem:[%s172 + $0x28] sm:$0xff] %v738
      %797 = vst [vmem:[%s172 + $0x30] sm:$0xff] %v740
      %798 = vst [vmem:[%s172 + $0x38] sm:$0xff] %v742
      %799 = vst [vmem:[%s172 + $0x40] sm:$0xff] %v744
      %800 = vst [vmem:[%s172 + $0x48] sm:$0xff] %v746
      %801 = vst [vmem:[%s172 + $0x50] sm:$0xff] %v748
      %802 = vst [vmem:[%s172 + $0x58] sm:$0xff] %v750
      %803 = vst [vmem:[%s172 + $0x60] sm:$0xff] %v752
      %804 = vst [vmem:[%s172 + $0x68] sm:$0xff] %v754
      %805 = vst [vmem:[%s172 + $0x70] sm:$0xff] %v756
      %806 = vst [vmem:[%s172 + $0x78] sm:$0xff] %v758
      %807 = vst [vmem:[%s172 + $0x80] sm:$0xff] %v760
      %808 = vst [vmem:[%s172 + $0x88] sm:$0xff] %v762
      %809 = vst [vmem:[%s172 + $0x90] sm:$0xff] %v764
      %810 = vst [vmem:[%s172 + $0x98] sm:$0xff] %v766
      %811 = vst [vmem:[%s172 + $0xa0] sm:$0xff] %v768
      %812 = vst [vmem:[%s172 + $0xa8] sm:$0xff] %v770
      %813 = vst [vmem:[%s172 + $0xb0] sm:$0xff] %v772
      %814 = vst [vmem:[%s172 + $0xb8] sm:$0xff] %v774
      %815 = vst [vmem:[%s172 + $0xc0] sm:$0xff] %v776
      %816 = vst [vmem:[%s172 + $0xc8] sm:$0xff] %v778
      %817 = vst [vmem:[%s172 + $0xd0] sm:$0xff] %v780
      %818 = vst [vmem:[%s172 + $0xd8] sm:$0xff] %v782
      %819 = vst [vmem:[%s172 + $0xe0] sm:$0xff] %v784
      %820 = vst [vmem:[%s172 + $0xe8] sm:$0xff] %v786
      %821 = vst [vmem:[%s172 + $0xf0] sm:$0xff] %v788
      %822 = vst [vmem:[%s172 + $0xf8] sm:$0xff] %v790
      %s823 = smul.u32 32, %s14
      %p824 = scmp.lt.s32.totalorder %s823, 63
      %s825 = scalar_select %p824, %s823, 63
      %s826 = smul.addr %s825, 8
      %s827 = scalar_lea.vmem %s3, %s826
      // Predicated region
      $region33: #{harm_attn_forward.11} parent=31 // pred_check
        %p828 = pneg %p100
      $region34: #{harm_attn_forward.11} parent=31 // pred_check_branch
        %830 = sbr.rel (%p828) target = $region36
      $region35: #{harm_attn_forward.11} parent=31 // pred_region
        %s831 = smul.u32 32, %s14
      $region36: #{harm_attn_forward.11} parent=31 // pred_fallthru
        _
    $region32: #{harm_attn_forward.11} parent=5 // pred_fallthru
      _
    %p832 = scmp.le.s32.totalorder 2, %s9
    // Predicated region
    $region37: #{harm_attn_forward.11} parent=5 // pred_check
      %p833 = pneg %p832
    $region38: #{harm_attn_forward.11} parent=5 // pred_check_branch
      %835 = sbr.rel (%p833) target = $region40
    $region39: #{harm_attn_forward.11} parent=5 // pred_region
      %s836 = ssub.s32 %s9, 2
      // Predicated region
      $region41: #{harm_attn_forward.11} parent=39 // pred_check
        %p837 = pneg %p106
      $region42: #{harm_attn_forward.11} parent=39 // pred_check_branch
        %839 = sbr.rel (%p837) target = $region44
      $region43: #{harm_attn_forward.11} parent=39 // pred_region
        %s840 = smul.u32 32, %s15
        %p841 = scmp.lt.s32.totalorder %s840, 63
        %s842 = scalar_select %p841, %s840, 63
        %s843 = smul.addr %s842, 8
        %s844 = scalar_lea.vmem %s3, %s843
      $region44: #{harm_attn_forward.11} parent=39 // pred_fallthru
        _
    $region40: #{harm_attn_forward.11} parent=5 // pred_fallthru
      _
  $region6: #{harm_attn_forward.11} parent=0 // loop_footer
    %s13 = sadd.s32 1, %s9
  $region7: #{harm_attn_forward.11} parent=0 // loop_footer_branch
    %8 = sbr.rel target = $region3
  $region8: #{harm_attn_forward.11} parent=0 // loop_exit
    _

</llo_original>
